<compile_context>
chip_gen: v7x
topology: tpu7x:2x2x1
jax: 0.10.0
libtpu: 0.0.40
codegen_flags: <defaults>
</compile_context>

<pallas_src>
import functools

import jax
import jax.numpy as jnp
from jax.experimental import pallas as pl
from jax.experimental.pallas import tpu as pltpu

# Module hyper-params implied by the torch code: b has 5 entries -> as_dim + 1 == 5
# -> input_size == 8.  hidden_size is free; pick 32.
INPUT_SIZE = 8
HIDDEN_SIZE = 32
AS_DIM = INPUT_SIZE // 2               # 4
OUT_COEFF = AS_DIM + 1                 # 5
S_WIDTH = INPUT_SIZE + AS_DIM          # 12 = state(8) + tmp(4)
B_SCALE = (1.0, 2.0, 1.0, 10.0, 1.0)   # the constant `b` tensor from the torch module

_LANE = 128


def _round_up(x, m):
    return ((x + m - 1) // m) * m


def actor_kernel(s_ref, w1_ref, b1_ref, w2_ref, b2_ref, w3_ref, b3_ref,
                 w4_ref, b4_ref, out_ref, *, num_chains):
    """One batch tile, feature-major (batch on the lane axis).

    s_ref   : (S_WIDTH, TB) f32; rows [0:8) = state, rows [8:12) = tmp
    w*_ref  : torch-layout (out_features, in_features), f32 or bf16 (pre-cast)
    b*_ref  : (out_features, 1) f32
    out_ref : (1, TB) f32, lane-dense per-row action
    """
    tb = out_ref.shape[-1]
    cw = tb // num_chains
    layers = ((w1_ref, b1_ref), (w2_ref, b2_ref), (w3_ref, b3_ref), (w4_ref, b4_ref))

    # Independent lane-chunk chains: the MXU work of one chain hides the EUP tanh
    # latency of the others (the per-chain dot->tanh->dot->tanh graph is serial).
    for c in range(num_chains):
        lo = c * cw                                    # static python int
        x = s_ref[0:INPUT_SIZE, lo:lo + cw]            # (8, cw) f32
        for w_ref, b_ref in layers:
            w = w_ref[...]                             # resident; already matmul dtype
            x = jnp.tanh(
                jnp.dot(w, x.astype(w.dtype), preferred_element_type=jnp.float32)
                + b_ref[...])                          # f32 bias add + f32 tanh
        # fw_imp: res = sum(cat([ones, tmp]) * (coeff * b)) with B_SCALE[0] == 1,
        # so res = x[0] + sum_j B_SCALE[j+1] * tmp[j] * x[j+1]  -> (1, cw)
        tmp = s_ref[INPUT_SIZE:S_WIDTH, lo:lo + cw]    # (4, cw) f32
        res = x[0:1, :]
        for j, scale in enumerate(B_SCALE[1:]):
            res = res + scale * tmp[j:j + 1, :] * x[j + 1:j + 2, :]
        out_ref[:, lo:lo + cw] = res


def _forward_math(s, params, matmul_dtype=jnp.float32):
    """Fused pure-JAX path (also the reference). Returns (B,) f32.

    Mirrors the kernel numerics: matmul operands cast to matmul_dtype, f32
    accumulation, f32 bias add and tanh.
    """
    state = s[:, :INPUT_SIZE].astype(jnp.float32)
    tmp = s[:, INPUT_SIZE:].astype(jnp.float32)
    x = state
    for w, b in zip(params[0::2], params[1::2]):
        pre = jnp.dot(x.astype(matmul_dtype), w.astype(matmul_dtype).T,
                      preferred_element_type=jnp.float32) + b.reshape(1, -1)
        x = jnp.tanh(pre)
    x = x * jnp.asarray(B_SCALE, jnp.float32)[None, :]
    ones = jnp.ones((s.shape[0], 1), jnp.float32)
    cat = jnp.concatenate([ones, tmp], axis=-1)
    return jnp.sum(cat * x, axis=1)
    # NOTE: the torch forward() also does `t = _.tolist()` (host transfer of the
    # coefficients), which has no effect on the returned action and is dropped.


def actor_forward(s, params, *, tile_b=8192, matmul_dtype=jnp.bfloat16,
                  num_chains=2, min_pallas_batch=512, keepdims=False):
    """s: (B, 12) f32. Returns (B,) f32 (or (B, 1) if keepdims=True, torch-shaped).

    For best end-to-end perf, jit the call site so the transpose/pad fuse.
    """
    batch = s.shape[0]
    assert s.shape[1] == S_WIDTH

    # Small-batch fast path: pallas_call launch + layout plumbing dwarf the compute.
    if batch < min_pallas_batch:
        res = _forward_math(s, params, matmul_dtype)
        return res.reshape(batch, 1) if keepdims else res

    pad_unit = num_chains * _LANE
    assert tile_b % pad_unit == 0
    # Keep >= 2 grid steps whenever there is enough work so the "parallel" batch axis
    # can shard across both TensorCores on v7x, then cap the tile at tile_b.
    cap = _round_up(-(-batch // 2), pad_unit) if batch > pad_unit else pad_unit
    tb = max(pad_unit, min(tile_b, cap))
    padded = _round_up(batch, tb)
    num_tiles = padded // tb

    w1, b1, w2, b2, w3, b3, w4, b4 = params
    if matmul_dtype != jnp.float32:
        # Pre-cast weights once (resident in VMEM in bf16); biases stay f32.
        w1, w2, w3, w4 = (w.astype(matmul_dtype) for w in (w1, w2, w3, w4))

    # Single wrapper-side layout pass: feature-major transpose (+ batch pad).
    s_t = s.T                                                  # (12, B)
    if padded != batch:
        s_t = jnp.pad(s_t, ((0, 0), (0, padded - batch)))      # (12, padded)

    def const_spec(shape):
        # Constant index_map -> parameters are DMA'd once and stay resident in VMEM.
        return pl.BlockSpec(shape, lambda i: (0, 0))

    out_t = pl.pallas_call(
        functools.partial(actor_kernel, num_chains=num_chains),
        out_shape=jax.ShapeDtypeStruct((1, padded), jnp.float32),
        grid=(num_tiles,),
        in_specs=[
            pl.BlockSpec((S_WIDTH, tb), lambda i: (0, i)),
            const_spec(w1.shape), const_spec(b1.shape),
            const_spec(w2.shape), const_spec(b2.shape),
            const_spec(w3.shape), const_spec(b3.shape),
            const_spec(w4.shape), const_spec(b4.shape),
        ],
        out_specs=pl.BlockSpec((1, tb), lambda i: (0, i)),
        compiler_params=pltpu.CompilerParams(
            dimension_semantics=("parallel",)),
    )(s_t, w1, b1, w2, b2, w3, b3, w4, b4)

    res = out_t[0, :batch]                                     # (B,) lane-dense result
    return res.reshape(batch, 1) if keepdims else res


def init_params(key):
    """Torch-style init: weight ~ N(0, 1) in (out, in) layout, bias = 0 as (out, 1)."""
    k1, k2, k3, k4 = jax.random.split(key, 4)
    w1 = jax.random.normal(k1, (HIDDEN_SIZE, INPUT_SIZE), jnp.float32)
    b1 = jnp.zeros((HIDDEN_SIZE, 1), jnp.float32)
    w2 = jax.random.normal(k2, (HIDDEN_SIZE, HIDDEN_SIZE), jnp.float32)
    b2 = jnp.zeros((HIDDEN_SIZE, 1), jnp.float32)
    w3 = jax.random.normal(k3, (HIDDEN_SIZE, HIDDEN_SIZE), jnp.float32)
    b3 = jnp.zeros((HIDDEN_SIZE, 1), jnp.float32)
    w4 = jax.random.normal(k4, (OUT_COEFF, HIDDEN_SIZE), jnp.float32)
    b4 = jnp.zeros((OUT_COEFF, 1), jnp.float32)
    return (w1, b1, w2, b2, w3, b3, w4, b4)


if __name__ == "__main__":
    key = jax.random.PRNGKey(0)
    kp, k_small, k_big = jax.random.split(key, 3)
    params = init_params(kp)

    # 1) Module-scale batch (2): small-batch fast path, torch-shaped (B, 1) output.
    s_small = jax.random.normal(k_small, (2, S_WIDTH), jnp.float32)
    a_small = actor_forward(s_small, params, keepdims=True)
    jax.block_until_ready(a_small)
    ref_small = _forward_math(s_small, params, jnp.bfloat16).reshape(-1, 1)
    assert a_small.shape == (2, 1)
    assert jnp.allclose(a_small, ref_small, atol=1e-5, rtol=1e-5), (
        float(jnp.max(jnp.abs(a_small - ref_small))))

    # 2) Multi-tile batch (padding + grid + resident weights), f32 MXU operands:
    #    checked against the f32 reference.
    s_big = jax.random.normal(k_big, (1030, S_WIDTH), jnp.float32)
    a_f32 = actor_forward(s_big, params, matmul_dtype=jnp.float32)
    jax.block_until_ready(a_f32)
    ref_f32 = _forward_math(s_big, params, jnp.float32)
    assert a_f32.shape == (1030,)
    assert jnp.allclose(a_f32, ref_f32, atol=1e-2, rtol=1e-2), (
        float(jnp.max(jnp.abs(a_f32 - ref_f32))))

    # 3) Default path (bf16 MXU operands, f32 accumulation/bias/tanh): validated
    #    like-for-like against a bf16-operand reference, plus finiteness.
    a_bf16 = actor_forward(s_big, params)
    jax.block_until_ready(a_bf16)
    ref_bf16 = _forward_math(s_big, params, jnp.bfloat16)
    assert a_bf16.shape == (1030,)
    assert bool(jnp.isfinite(a_bf16).all())
    assert jnp.allclose(a_bf16, ref_bf16, atol=5e-2, rtol=5e-2), (
        float(jnp.max(jnp.abs(a_bf16 - ref_bf16))))

    print("KERNEL_OK")
</pallas_src>

<mosaic_0001>
module attributes {stable_mosaic.version = 11 : i64} {
  func.func @actor_kernel(%arg0: i32, %arg1: memref<12x768xf32, #tpu.memory_space<vmem>>, %arg2: memref<32x8xf32, #tpu.memory_space<vmem>>, %arg3: memref<32x1xf32, #tpu.memory_space<vmem>>, %arg4: memref<32x32xf32, #tpu.memory_space<vmem>>, %arg5: memref<32x1xf32, #tpu.memory_space<vmem>>, %arg6: memref<32x32xf32, #tpu.memory_space<vmem>>, %arg7: memref<32x1xf32, #tpu.memory_space<vmem>>, %arg8: memref<5x32xf32, #tpu.memory_space<vmem>>, %arg9: memref<5x1xf32, #tpu.memory_space<vmem>>, %arg10: memref<1x768xf32, #tpu.memory_space<vmem>>) attributes {dimension_semantics = [#tpu.dimension_semantics<parallel>], iteration_bounds = array<i64: 2>, scalar_prefetch = 0 : i64, scratch_operands = 0 : i64, tpu.core_type = #tpu.core_type<tc>, window_params = [{transform_indices = @transform_0, window_bounds = array<i64: 12, 768>}, {pipeline_mode = #tpu.pipeline_mode<synchronous>, transform_indices = @transform_1, window_bounds = array<i64: 32, 8>}, {pipeline_mode = #tpu.pipeline_mode<synchronous>, transform_indices = @transform_2, window_bounds = array<i64: 32, 1>}, {pipeline_mode = #tpu.pipeline_mode<synchronous>, transform_indices = @transform_3, window_bounds = array<i64: 32, 32>}, {pipeline_mode = #tpu.pipeline_mode<synchronous>, transform_indices = @transform_4, window_bounds = array<i64: 32, 1>}, {pipeline_mode = #tpu.pipeline_mode<synchronous>, transform_indices = @transform_5, window_bounds = array<i64: 32, 32>}, {pipeline_mode = #tpu.pipeline_mode<synchronous>, transform_indices = @transform_6, window_bounds = array<i64: 32, 1>}, {pipeline_mode = #tpu.pipeline_mode<synchronous>, transform_indices = @transform_7, window_bounds = array<i64: 5, 32>}, {pipeline_mode = #tpu.pipeline_mode<synchronous>, transform_indices = @transform_8, window_bounds = array<i64: 5, 1>}, {transform_indices = @transform_9, window_bounds = array<i64: 1, 768>}]} {
    %c0 = arith.constant 0 : index
    %c0_0 = arith.constant 0 : index
    %0 = vector.load %arg1[%c0, %c0_0] : memref<12x768xf32, #tpu.memory_space<vmem>>, vector<8x384xf32>
    %c0_1 = arith.constant 0 : index
    %c0_2 = arith.constant 0 : index
    %1 = vector.load %arg2[%c0_1, %c0_2] : memref<32x8xf32, #tpu.memory_space<vmem>>, vector<32x8xf32>
    %cst = arith.constant dense<0.000000e+00> : vector<32x384xf32>
    %2 = tpu.matmul %1, %0, %cst {dimension_numbers = #tpu.dot_dimension_numbers<[1], [0], [0], [1], [0, 0, 1, 1], [], []>} : vector<32x8xf32>, vector<8x384xf32>, vector<32x384xf32> -> vector<32x384xf32>
    %c0_3 = arith.constant 0 : index
    %c0_4 = arith.constant 0 : index
    %3 = vector.load %arg3[%c0_3, %c0_4] : memref<32x1xf32, #tpu.memory_space<vmem>>, vector<32x1xf32>
    %4 = vector.broadcast %3 : vector<32x1xf32> to vector<32x384xf32>
    %5 = arith.addf %2, %4 : vector<32x384xf32>
    %6 = math.tanh %5 : vector<32x384xf32>
    %c0_5 = arith.constant 0 : index
    %c0_6 = arith.constant 0 : index
    %7 = vector.load %arg4[%c0_5, %c0_6] : memref<32x32xf32, #tpu.memory_space<vmem>>, vector<32x32xf32>
    %cst_7 = arith.constant dense<0.000000e+00> : vector<32x384xf32>
    %8 = tpu.matmul %7, %6, %cst_7 {dimension_numbers = #tpu.dot_dimension_numbers<[1], [0], [0], [1], [0, 0, 1, 1], [], []>} : vector<32x32xf32>, vector<32x384xf32>, vector<32x384xf32> -> vector<32x384xf32>
    %c0_8 = arith.constant 0 : index
    %c0_9 = arith.constant 0 : index
    %9 = vector.load %arg5[%c0_8, %c0_9] : memref<32x1xf32, #tpu.memory_space<vmem>>, vector<32x1xf32>
    %10 = vector.broadcast %9 : vector<32x1xf32> to vector<32x384xf32>
    %11 = arith.addf %8, %10 : vector<32x384xf32>
    %12 = math.tanh %11 : vector<32x384xf32>
    %c0_10 = arith.constant 0 : index
    %c0_11 = arith.constant 0 : index
    %13 = vector.load %arg6[%c0_10, %c0_11] : memref<32x32xf32, #tpu.memory_space<vmem>>, vector<32x32xf32>
    %cst_12 = arith.constant dense<0.000000e+00> : vector<32x384xf32>
    %14 = tpu.matmul %13, %12, %cst_12 {dimension_numbers = #tpu.dot_dimension_numbers<[1], [0], [0], [1], [0, 0, 1, 1], [], []>} : vector<32x32xf32>, vector<32x384xf32>, vector<32x384xf32> -> vector<32x384xf32>
    %c0_13 = arith.constant 0 : index
    %c0_14 = arith.constant 0 : index
    %15 = vector.load %arg7[%c0_13, %c0_14] : memref<32x1xf32, #tpu.memory_space<vmem>>, vector<32x1xf32>
    %16 = vector.broadcast %15 : vector<32x1xf32> to vector<32x384xf32>
    %17 = arith.addf %14, %16 : vector<32x384xf32>
    %18 = math.tanh %17 : vector<32x384xf32>
    %c0_15 = arith.constant 0 : index
    %c0_16 = arith.constant 0 : index
    %19 = vector.load %arg8[%c0_15, %c0_16] : memref<5x32xf32, #tpu.memory_space<vmem>>, vector<5x32xf32>
    %cst_17 = arith.constant dense<0.000000e+00> : vector<5x384xf32>
    %20 = tpu.matmul %19, %18, %cst_17 {dimension_numbers = #tpu.dot_dimension_numbers<[1], [0], [0], [1], [0, 0, 1, 1], [], []>} : vector<5x32xf32>, vector<32x384xf32>, vector<5x384xf32> -> vector<5x384xf32>
    %c0_18 = arith.constant 0 : index
    %c0_19 = arith.constant 0 : index
    %21 = vector.load %arg9[%c0_18, %c0_19] : memref<5x1xf32, #tpu.memory_space<vmem>>, vector<5x1xf32>
    %22 = vector.broadcast %21 : vector<5x1xf32> to vector<5x384xf32>
    %23 = arith.addf %20, %22 : vector<5x384xf32>
    %24 = math.tanh %23 : vector<5x384xf32>
    %c8 = arith.constant 8 : index
    %c0_20 = arith.constant 0 : index
    %25 = vector.load %arg1[%c8, %c0_20] : memref<12x768xf32, #tpu.memory_space<vmem>>, vector<4x384xf32>
    %26 = vector.extract_strided_slice %24 {offsets = [0, 0], sizes = [1, 384], strides = [1, 1]} : vector<5x384xf32> to vector<1x384xf32>
    %27 = vector.extract_strided_slice %25 {offsets = [0, 0], sizes = [1, 384], strides = [1, 1]} : vector<4x384xf32> to vector<1x384xf32>
    %cst_21 = arith.constant 2.000000e+00 : f32
    %28 = vector.broadcast %cst_21 : f32 to vector<1x384xf32>
    %29 = arith.mulf %28, %27 : vector<1x384xf32>
    %30 = vector.extract_strided_slice %24 {offsets = [1, 0], sizes = [1, 384], strides = [1, 1]} : vector<5x384xf32> to vector<1x384xf32>
    %31 = arith.mulf %29, %30 : vector<1x384xf32>
    %32 = arith.addf %26, %31 : vector<1x384xf32>
    %33 = vector.extract_strided_slice %25 {offsets = [1, 0], sizes = [1, 384], strides = [1, 1]} : vector<4x384xf32> to vector<1x384xf32>
    %cst_22 = arith.constant 1.000000e+00 : f32
    %34 = vector.broadcast %cst_22 : f32 to vector<1x384xf32>
    %35 = arith.mulf %34, %33 : vector<1x384xf32>
    %36 = vector.extract_strided_slice %24 {offsets = [2, 0], sizes = [1, 384], strides = [1, 1]} : vector<5x384xf32> to vector<1x384xf32>
    %37 = arith.mulf %35, %36 : vector<1x384xf32>
    %38 = arith.addf %32, %37 : vector<1x384xf32>
    %39 = vector.extract_strided_slice %25 {offsets = [2, 0], sizes = [1, 384], strides = [1, 1]} : vector<4x384xf32> to vector<1x384xf32>
    %cst_23 = arith.constant 1.000000e+01 : f32
    %40 = vector.broadcast %cst_23 : f32 to vector<1x384xf32>
    %41 = arith.mulf %40, %39 : vector<1x384xf32>
    %42 = vector.extract_strided_slice %24 {offsets = [3, 0], sizes = [1, 384], strides = [1, 1]} : vector<5x384xf32> to vector<1x384xf32>
    %43 = arith.mulf %41, %42 : vector<1x384xf32>
    %44 = arith.addf %38, %43 : vector<1x384xf32>
    %45 = vector.extract_strided_slice %25 {offsets = [3, 0], sizes = [1, 384], strides = [1, 1]} : vector<4x384xf32> to vector<1x384xf32>
    %cst_24 = arith.constant 1.000000e+00 : f32
    %46 = vector.broadcast %cst_24 : f32 to vector<1x384xf32>
    %47 = arith.mulf %46, %45 : vector<1x384xf32>
    %48 = vector.extract_strided_slice %24 {offsets = [4, 0], sizes = [1, 384], strides = [1, 1]} : vector<5x384xf32> to vector<1x384xf32>
    %49 = arith.mulf %47, %48 : vector<1x384xf32>
    %50 = arith.addf %44, %49 : vector<1x384xf32>
    %c0_25 = arith.constant 0 : index
    %c0_26 = arith.constant 0 : index
    %51 = vector.load %arg10[%c0_25, %c0_26] : memref<1x768xf32, #tpu.memory_space<vmem>>, vector<1x384xf32>
    tpu.vector_store %arg10[%c0_25, %c0_26], %50 {strides = array<i32>} : memref<1x768xf32, #tpu.memory_space<vmem>>, vector<1x384xf32>,
    %c0_27 = arith.constant 0 : index
    %c384 = arith.constant 384 : index
    %52 = vector.load %arg1[%c0_27, %c384] : memref<12x768xf32, #tpu.memory_space<vmem>>, vector<8x384xf32>
    %c0_28 = arith.constant 0 : index
    %c0_29 = arith.constant 0 : index
    %53 = vector.load %arg2[%c0_28, %c0_29] : memref<32x8xf32, #tpu.memory_space<vmem>>, vector<32x8xf32>
    %cst_30 = arith.constant dense<0.000000e+00> : vector<32x384xf32>
    %54 = tpu.matmul %53, %52, %cst_30 {dimension_numbers = #tpu.dot_dimension_numbers<[1], [0], [0], [1], [0, 0, 1, 1], [], []>} : vector<32x8xf32>, vector<8x384xf32>, vector<32x384xf32> -> vector<32x384xf32>
    %c0_31 = arith.constant 0 : index
    %c0_32 = arith.constant 0 : index
    %55 = vector.load %arg3[%c0_31, %c0_32] : memref<32x1xf32, #tpu.memory_space<vmem>>, vector<32x1xf32>
    %56 = vector.broadcast %55 : vector<32x1xf32> to vector<32x384xf32>
    %57 = arith.addf %54, %56 : vector<32x384xf32>
    %58 = math.tanh %57 : vector<32x384xf32>
    %c0_33 = arith.constant 0 : index
    %c0_34 = arith.constant 0 : index
    %59 = vector.load %arg4[%c0_33, %c0_34] : memref<32x32xf32, #tpu.memory_space<vmem>>, vector<32x32xf32>
    %cst_35 = arith.constant dense<0.000000e+00> : vector<32x384xf32>
    %60 = tpu.matmul %59, %58, %cst_35 {dimension_numbers = #tpu.dot_dimension_numbers<[1], [0], [0], [1], [0, 0, 1, 1], [], []>} : vector<32x32xf32>, vector<32x384xf32>, vector<32x384xf32> -> vector<32x384xf32>
    %c0_36 = arith.constant 0 : index
    %c0_37 = arith.constant 0 : index
    %61 = vector.load %arg5[%c0_36, %c0_37] : memref<32x1xf32, #tpu.memory_space<vmem>>, vector<32x1xf32>
    %62 = vector.broadcast %61 : vector<32x1xf32> to vector<32x384xf32>
    %63 = arith.addf %60, %62 : vector<32x384xf32>
    %64 = math.tanh %63 : vector<32x384xf32>
    %c0_38 = arith.constant 0 : index
    %c0_39 = arith.constant 0 : index
    %65 = vector.load %arg6[%c0_38, %c0_39] : memref<32x32xf32, #tpu.memory_space<vmem>>, vector<32x32xf32>
    %cst_40 = arith.constant dense<0.000000e+00> : vector<32x384xf32>
    %66 = tpu.matmul %65, %64, %cst_40 {dimension_numbers = #tpu.dot_dimension_numbers<[1], [0], [0], [1], [0, 0, 1, 1], [], []>} : vector<32x32xf32>, vector<32x384xf32>, vector<32x384xf32> -> vector<32x384xf32>
    %c0_41 = arith.constant 0 : index
    %c0_42 = arith.constant 0 : index
    %67 = vector.load %arg7[%c0_41, %c0_42] : memref<32x1xf32, #tpu.memory_space<vmem>>, vector<32x1xf32>
    %68 = vector.broadcast %67 : vector<32x1xf32> to vector<32x384xf32>
    %69 = arith.addf %66, %68 : vector<32x384xf32>
    %70 = math.tanh %69 : vector<32x384xf32>
    %c0_43 = arith.constant 0 : index
    %c0_44 = arith.constant 0 : index
    %71 = vector.load %arg8[%c0_43, %c0_44] : memref<5x32xf32, #tpu.memory_space<vmem>>, vector<5x32xf32>
    %cst_45 = arith.constant dense<0.000000e+00> : vector<5x384xf32>
    %72 = tpu.matmul %71, %70, %cst_45 {dimension_numbers = #tpu.dot_dimension_numbers<[1], [0], [0], [1], [0, 0, 1, 1], [], []>} : vector<5x32xf32>, vector<32x384xf32>, vector<5x384xf32> -> vector<5x384xf32>
    %c0_46 = arith.constant 0 : index
    %c0_47 = arith.constant 0 : index
    %73 = vector.load %arg9[%c0_46, %c0_47] : memref<5x1xf32, #tpu.memory_space<vmem>>, vector<5x1xf32>
    %74 = vector.broadcast %73 : vector<5x1xf32> to vector<5x384xf32>
    %75 = arith.addf %72, %74 : vector<5x384xf32>
    %76 = math.tanh %75 : vector<5x384xf32>
    %c8_48 = arith.constant 8 : index
    %c384_49 = arith.constant 384 : index
    %77 = vector.load %arg1[%c8_48, %c384_49] : memref<12x768xf32, #tpu.memory_space<vmem>>, vector<4x384xf32>
    %78 = vector.extract_strided_slice %76 {offsets = [0, 0], sizes = [1, 384], strides = [1, 1]} : vector<5x384xf32> to vector<1x384xf32>
    %79 = vector.extract_strided_slice %77 {offsets = [0, 0], sizes = [1, 384], strides = [1, 1]} : vector<4x384xf32> to vector<1x384xf32>
    %cst_50 = arith.constant 2.000000e+00 : f32
    %80 = vector.broadcast %cst_50 : f32 to vector<1x384xf32>
    %81 = arith.mulf %80, %79 : vector<1x384xf32>
    %82 = vector.extract_strided_slice %76 {offsets = [1, 0], sizes = [1, 384], strides = [1, 1]} : vector<5x384xf32> to vector<1x384xf32>
    %83 = arith.mulf %81, %82 : vector<1x384xf32>
    %84 = arith.addf %78, %83 : vector<1x384xf32>
    %85 = vector.extract_strided_slice %77 {offsets = [1, 0], sizes = [1, 384], strides = [1, 1]} : vector<4x384xf32> to vector<1x384xf32>
    %cst_51 = arith.constant 1.000000e+00 : f32
    %86 = vector.broadcast %cst_51 : f32 to vector<1x384xf32>
    %87 = arith.mulf %86, %85 : vector<1x384xf32>
    %88 = vector.extract_strided_slice %76 {offsets = [2, 0], sizes = [1, 384], strides = [1, 1]} : vector<5x384xf32> to vector<1x384xf32>
    %89 = arith.mulf %87, %88 : vector<1x384xf32>
    %90 = arith.addf %84, %89 : vector<1x384xf32>
    %91 = vector.extract_strided_slice %77 {offsets = [2, 0], sizes = [1, 384], strides = [1, 1]} : vector<4x384xf32> to vector<1x384xf32>
    %cst_52 = arith.constant 1.000000e+01 : f32
    %92 = vector.broadcast %cst_52 : f32 to vector<1x384xf32>
    %93 = arith.mulf %92, %91 : vector<1x384xf32>
    %94 = vector.extract_strided_slice %76 {offsets = [3, 0], sizes = [1, 384], strides = [1, 1]} : vector<5x384xf32> to vector<1x384xf32>
    %95 = arith.mulf %93, %94 : vector<1x384xf32>
    %96 = arith.addf %90, %95 : vector<1x384xf32>
    %97 = vector.extract_strided_slice %77 {offsets = [3, 0], sizes = [1, 384], strides = [1, 1]} : vector<4x384xf32> to vector<1x384xf32>
    %cst_53 = arith.constant 1.000000e+00 : f32
    %98 = vector.broadcast %cst_53 : f32 to vector<1x384xf32>
    %99 = arith.mulf %98, %97 : vector<1x384xf32>
    %100 = vector.extract_strided_slice %76 {offsets = [4, 0], sizes = [1, 384], strides = [1, 1]} : vector<5x384xf32> to vector<1x384xf32>
    %101 = arith.mulf %99, %100 : vector<1x384xf32>
    %102 = arith.addf %96, %101 : vector<1x384xf32>
    %c0_54 = arith.constant 0 : index
    %c384_55 = arith.constant 384 : index
    %103 = vector.load %arg10[%c0_54, %c384_55] : memref<1x768xf32, #tpu.memory_space<vmem>>, vector<1x384xf32>
    tpu.vector_store %arg10[%c0_54, %c384_55], %102 {strides = array<i32>} : memref<1x768xf32, #tpu.memory_space<vmem>>, vector<1x384xf32>,
    return
  }
  func.func @transform_0(%arg0: i32) -> (i32, i32) {
    %c0_i32 = arith.constant 0 : i32
    %c0_i32_0 = arith.constant 0 : i32
    return %c0_i32, %arg0 : i32, i32
  }
  func.func @transform_1(%arg0: i32) -> (i32, i32) {
    %c0_i32 = arith.constant 0 : i32
    %c0_i32_0 = arith.constant 0 : i32
    %c0_i32_1 = arith.constant 0 : i32
    return %c0_i32, %c0_i32_0 : i32, i32
  }
  func.func @transform_2(%arg0: i32) -> (i32, i32) {
    %c0_i32 = arith.constant 0 : i32
    %c0_i32_0 = arith.constant 0 : i32
    %c0_i32_1 = arith.constant 0 : i32
    return %c0_i32, %c0_i32_0 : i32, i32
  }
  func.func @transform_3(%arg0: i32) -> (i32, i32) {
    %c0_i32 = arith.constant 0 : i32
    %c0_i32_0 = arith.constant 0 : i32
    %c0_i32_1 = arith.constant 0 : i32
    return %c0_i32, %c0_i32_0 : i32, i32
  }
  func.func @transform_4(%arg0: i32) -> (i32, i32) {
    %c0_i32 = arith.constant 0 : i32
    %c0_i32_0 = arith.constant 0 : i32
    %c0_i32_1 = arith.constant 0 : i32
    return %c0_i32, %c0_i32_0 : i32, i32
  }
  func.func @transform_5(%arg0: i32) -> (i32, i32) {
    %c0_i32 = arith.constant 0 : i32
    %c0_i32_0 = arith.constant 0 : i32
    %c0_i32_1 = arith.constant 0 : i32
    return %c0_i32, %c0_i32_0 : i32, i32
  }
  func.func @transform_6(%arg0: i32) -> (i32, i32) {
    %c0_i32 = arith.constant 0 : i32
    %c0_i32_0 = arith.constant 0 : i32
    %c0_i32_1 = arith.constant 0 : i32
    return %c0_i32, %c0_i32_0 : i32, i32
  }
  func.func @transform_7(%arg0: i32) -> (i32, i32) {
    %c0_i32 = arith.constant 0 : i32
    %c0_i32_0 = arith.constant 0 : i32
    %c0_i32_1 = arith.constant 0 : i32
    return %c0_i32, %c0_i32_0 : i32, i32
  }
  func.func @transform_8(%arg0: i32) -> (i32, i32) {
    %c0_i32 = arith.constant 0 : i32
    %c0_i32_0 = arith.constant 0 : i32
    %c0_i32_1 = arith.constant 0 : i32
    return %c0_i32, %c0_i32_0 : i32, i32
  }
  func.func @transform_9(%arg0: i32) -> (i32, i32) {
    %c0_i32 = arith.constant 0 : i32
    %c0_i32_0 = arith.constant 0 : i32
    return %c0_i32, %arg0 : i32, i32
  }
}

</mosaic_0001>

<llo_original>
// kernel: tpu_custom_call.1
$region0: #{tpu_custom_call.1}
  #allocation0 [shape = 'u32[]', space=smem, size = 0x4, offset = 0x4, fixed_abs, tag = 'smem constant byte address 0x4 - core index']
  #allocation1 [shape = 'u32[144,128]{1,0:T(1,128)}', space=vmem, size = 0x12000, scoped, tag = 'internal scratch']
  %s0 = inlined_call_operand.hbm [shape: f32[12,1536], index: 0, kind: input, shape index: {}]
  %s1 = inlined_call_operand.vmem [shape: f32[32,8], index: 1, kind: input, shape index: {}]
  %s2 = inlined_call_operand.vmem [shape: f32[32,1], index: 2, kind: input, shape index: {}]
  %s3 = inlined_call_operand.vmem [shape: f32[32,32], index: 3, kind: input, shape index: {}]
  %s4 = inlined_call_operand.vmem [shape: f32[32,1], index: 4, kind: input, shape index: {}]
  %s5 = inlined_call_operand.vmem [shape: f32[32,32], index: 5, kind: input, shape index: {}]
  %s6 = inlined_call_operand.vmem [shape: f32[32,1], index: 6, kind: input, shape index: {}]
  %s7 = inlined_call_operand.vmem [shape: f32[5,32], index: 7, kind: input, shape index: {}]
  %s8 = inlined_call_operand.vmem [shape: f32[5,1], index: 8, kind: input, shape index: {}]
  %s9 = inlined_call_operand.hbm [shape: f32[1,1536], index: 9, kind: output, shape index: {}]
  %s10 = sld [smem:[#allocation0]]
  $region73: #{tpu_custom_call.1} parent=0
    _
  %s12 = ssub.s32 1, %s10
  %s13 = scalar_select 0, %s12, %s10
  $region1: #{tpu_custom_call.1} parent=0
    #allocation2 [shape = 'u8[98304]{0}', space=vmem, size = 0x18000, scoped, tag = 'input window, operand 0']
    #allocation3 [shape = 's32[2]{0}', space=sflag, size = 0x8, scoped, tag = 'scoped memory for tpu_custom_call.1']
    #allocation4 [shape = 's32[2]{0}', space=sflag, size = 0x8, scoped, tag = 'scoped memory for tpu_custom_call.1']
    #allocation5 [shape = 'u8[6144]{0}', space=vmem, size = 0x1800, scoped, tag = 'output window, operand 0']
    %14 = vsyncpa [#allocation3], 0
    %s15 = scalar_lea.sflag [#allocation3], 1
    %16 = vsyncpa %s15, 0
    %17 = vsyncpa [#allocation4], 0
    %s18 = scalar_lea.sflag [#allocation4], 1
    %19 = vsyncpa %s18, 0
    loop: start=0, step=1, limit=4
    $region2: #{tpu_custom_call.1} parent=1 // loop_pre_header
      _
    $region3: #{tpu_custom_call.1} parent=1 // loop_header
      %s21 = sphi 0, %s25
      %p22 = scmp.ge.s32.totalorder %s21, 4
      %s31 = sphi 0, %s33
      %s34 = sphi 0, %s31
      %s35 = sphi 0, %s34
      %s51 = sphi 0, %s35
      %s55 = sphi 0, %s55
      %s57 = sphi 0, %s55
      %s58 = sphi 0, %s57
      %s72 = sphi 0, %s58
      %s76 = sphi 0, %s76
      %s78 = sphi 0, %s76
      %s79 = sphi 0, %s78
      %s93 = sphi 0, %s79
      %s97 = sphi 0, %s97
      %s99 = sphi 0, %s97
      %s100 = sphi 0, %s99
      %s114 = sphi 0, %s100
      %s118 = sphi 0, %s118
      %s120 = sphi 0, %s118
      %s121 = sphi 0, %s120
      %s135 = sphi 0, %s121
      %s139 = sphi 0, %s139
      %s141 = sphi 0, %s139
      %s142 = sphi 0, %s141
      %s156 = sphi 0, %s142
      %s160 = sphi 0, %s160
      %s162 = sphi 0, %s160
      %s163 = sphi 0, %s162
      %s177 = sphi 0, %s163
      %s181 = sphi 0, %s181
      %s183 = sphi 0, %s181
      %s184 = sphi 0, %s183
      %s198 = sphi 0, %s184
      %s202 = sphi 0, %s202
      %s204 = sphi 0, %s202
      %s205 = sphi 0, %s204
      %s219 = sphi 0, %s205
      %s225 = sphi 0, %s227
      %s228 = sphi 0, %s225
      %s229 = sphi 0, %s228
      %s245 = sphi 0, %s229
    $region4: #{tpu_custom_call.1} parent=1 // loop_header_branch
      %24 = sbr.rel (%p22) target = $region8
    $region5: #{tpu_custom_call.1} parent=1 // loop_body
      %s26 = ssub.s32 %s21, 1
      %s27 = ssub.s32 %s21, 2
      %s28 = sadd.s32 %s21, 1
      %s29 = ssub.s32 %s21, %s28
      %p30 = scmp.eq.s32.totalorder %s29, 0
      %s32 = sadd.s32 %s31, 1
      %s33 = scalar_select %p30, %s31, %s32
      %p36 = pneg %p30
      %p37 = scmp.eq.s32.totalorder %s21, 1
      %p38 = por %p36, %p37
      %p39 = scmp.ne.s32.totalorder %s31, %s34
      %p40 = scmp.eq.s32.totalorder %s21, 0
      %p41 = por %p39, %p40
      %p42 = scmp.ne.s32.totalorder %s31, %s34
      %p43 = scmp.eq.s32.totalorder %s26, 1
      %p44 = por %p42, %p43
      %p45 = scmp.ne.s32.totalorder %s34, %s35
      %p46 = scmp.eq.s32.totalorder %s26, 0
      %p47 = por %p45, %p46
      %p48 = scmp.ne.s32.totalorder %s34, %s35
      %p49 = scmp.eq.s32.totalorder %s27, 1
      %p50 = por %p48, %p49
      %p52 = scmp.ne.s32.totalorder %s35, %s51
      %p53 = scmp.eq.s32.totalorder %s27, 0
      %p54 = por %p52, %p53
      %s56 = sadd.s32 %s55, 1
      %p59 = scmp.eq.s32.totalorder %s21, 1
      %p60 = scmp.ne.s32.totalorder %s55, %s57
      %p61 = scmp.eq.s32.totalorder %s21, 0
      %p62 = por %p60, %p61
      %p63 = scmp.ne.s32.totalorder %s55, %s57
      %p64 = scmp.eq.s32.totalorder %s26, 1
      %p65 = por %p63, %p64
      %p66 = scmp.ne.s32.totalorder %s57, %s58
      %p67 = scmp.eq.s32.totalorder %s26, 0
      %p68 = por %p66, %p67
      %p69 = scmp.ne.s32.totalorder %s57, %s58
      %p70 = scmp.eq.s32.totalorder %s27, 1
      %p71 = por %p69, %p70
      %p73 = scmp.ne.s32.totalorder %s58, %s72
      %p74 = scmp.eq.s32.totalorder %s27, 0
      %p75 = por %p73, %p74
      %s77 = sadd.s32 %s76, 1
      %p80 = scmp.eq.s32.totalorder %s21, 1
      %p81 = scmp.ne.s32.totalorder %s76, %s78
      %p82 = scmp.eq.s32.totalorder %s21, 0
      %p83 = por %p81, %p82
      %p84 = scmp.ne.s32.totalorder %s76, %s78
      %p85 = scmp.eq.s32.totalorder %s26, 1
      %p86 = por %p84, %p85
      %p87 = scmp.ne.s32.totalorder %s78, %s79
      %p88 = scmp.eq.s32.totalorder %s26, 0
      %p89 = por %p87, %p88
      %p90 = scmp.ne.s32.totalorder %s78, %s79
      %p91 = scmp.eq.s32.totalorder %s27, 1
      %p92 = por %p90, %p91
      %p94 = scmp.ne.s32.totalorder %s79, %s93
      %p95 = scmp.eq.s32.totalorder %s27, 0
      %p96 = por %p94, %p95
      %s98 = sadd.s32 %s97, 1
      %p101 = scmp.eq.s32.totalorder %s21, 1
      %p102 = scmp.ne.s32.totalorder %s97, %s99
      %p103 = scmp.eq.s32.totalorder %s21, 0
      %p104 = por %p102, %p103
      %p105 = scmp.ne.s32.totalorder %s97, %s99
      %p106 = scmp.eq.s32.totalorder %s26, 1
      %p107 = por %p105, %p106
      %p108 = scmp.ne.s32.totalorder %s99, %s100
      %p109 = scmp.eq.s32.totalorder %s26, 0
      %p110 = por %p108, %p109
      %p111 = scmp.ne.s32.totalorder %s99, %s100
      %p112 = scmp.eq.s32.totalorder %s27, 1
      %p113 = por %p111, %p112
      %p115 = scmp.ne.s32.totalorder %s100, %s114
      %p116 = scmp.eq.s32.totalorder %s27, 0
      %p117 = por %p115, %p116
      %s119 = sadd.s32 %s118, 1
      %p122 = scmp.eq.s32.totalorder %s21, 1
      %p123 = scmp.ne.s32.totalorder %s118, %s120
      %p124 = scmp.eq.s32.totalorder %s21, 0
      %p125 = por %p123, %p124
      %p126 = scmp.ne.s32.totalorder %s118, %s120
      %p127 = scmp.eq.s32.totalorder %s26, 1
      %p128 = por %p126, %p127
      %p129 = scmp.ne.s32.totalorder %s120, %s121
      %p130 = scmp.eq.s32.totalorder %s26, 0
      %p131 = por %p129, %p130
      %p132 = scmp.ne.s32.totalorder %s120, %s121
      %p133 = scmp.eq.s32.totalorder %s27, 1
      %p134 = por %p132, %p133
      %p136 = scmp.ne.s32.totalorder %s121, %s135
      %p137 = scmp.eq.s32.totalorder %s27, 0
      %p138 = por %p136, %p137
      %s140 = sadd.s32 %s139, 1
      %p143 = scmp.eq.s32.totalorder %s21, 1
      %p144 = scmp.ne.s32.totalorder %s139, %s141
      %p145 = scmp.eq.s32.totalorder %s21, 0
      %p146 = por %p144, %p145
      %p147 = scmp.ne.s32.totalorder %s139, %s141
      %p148 = scmp.eq.s32.totalorder %s26, 1
      %p149 = por %p147, %p148
      %p150 = scmp.ne.s32.totalorder %s141, %s142
      %p151 = scmp.eq.s32.totalorder %s26, 0
      %p152 = por %p150, %p151
      %p153 = scmp.ne.s32.totalorder %s141, %s142
      %p154 = scmp.eq.s32.totalorder %s27, 1
      %p155 = por %p153, %p154
      %p157 = scmp.ne.s32.totalorder %s142, %s156
      %p158 = scmp.eq.s32.totalorder %s27, 0
      %p159 = por %p157, %p158
      %s161 = sadd.s32 %s160, 1
      %p164 = scmp.eq.s32.totalorder %s21, 1
      %p165 = scmp.ne.s32.totalorder %s160, %s162
      %p166 = scmp.eq.s32.totalorder %s21, 0
      %p167 = por %p165, %p166
      %p168 = scmp.ne.s32.totalorder %s160, %s162
      %p169 = scmp.eq.s32.totalorder %s26, 1
      %p170 = por %p168, %p169
      %p171 = scmp.ne.s32.totalorder %s162, %s163
      %p172 = scmp.eq.s32.totalorder %s26, 0
      %p173 = por %p171, %p172
      %p174 = scmp.ne.s32.totalorder %s162, %s163
      %p175 = scmp.eq.s32.totalorder %s27, 1
      %p176 = por %p174, %p175
      %p178 = scmp.ne.s32.totalorder %s163, %s177
      %p179 = scmp.eq.s32.totalorder %s27, 0
      %p180 = por %p178, %p179
      %s182 = sadd.s32 %s181, 1
      %p185 = scmp.eq.s32.totalorder %s21, 1
      %p186 = scmp.ne.s32.totalorder %s181, %s183
      %p187 = scmp.eq.s32.totalorder %s21, 0
      %p188 = por %p186, %p187
      %p189 = scmp.ne.s32.totalorder %s181, %s183
      %p190 = scmp.eq.s32.totalorder %s26, 1
      %p191 = por %p189, %p190
      %p192 = scmp.ne.s32.totalorder %s183, %s184
      %p193 = scmp.eq.s32.totalorder %s26, 0
      %p194 = por %p192, %p193
      %p195 = scmp.ne.s32.totalorder %s183, %s184
      %p196 = scmp.eq.s32.totalorder %s27, 1
      %p197 = por %p195, %p196
      %p199 = scmp.ne.s32.totalorder %s184, %s198
      %p200 = scmp.eq.s32.totalorder %s27, 0
      %p201 = por %p199, %p200
      %s203 = sadd.s32 %s202, 1
      %p206 = scmp.eq.s32.totalorder %s21, 1
      %p207 = scmp.ne.s32.totalorder %s202, %s204
      %p208 = scmp.eq.s32.totalorder %s21, 0
      %p209 = por %p207, %p208
      %p210 = scmp.ne.s32.totalorder %s202, %s204
      %p211 = scmp.eq.s32.totalorder %s26, 1
      %p212 = por %p210, %p211
      %p213 = scmp.ne.s32.totalorder %s204, %s205
      %p214 = scmp.eq.s32.totalorder %s26, 0
      %p215 = por %p213, %p214
      %p216 = scmp.ne.s32.totalorder %s204, %s205
      %p217 = scmp.eq.s32.totalorder %s27, 1
      %p218 = por %p216, %p217
      %p220 = scmp.ne.s32.totalorder %s205, %s219
      %p221 = scmp.eq.s32.totalorder %s27, 0
      %p222 = por %p220, %p221
      %s223 = ssub.s32 %s21, %s28
      %p224 = scmp.eq.s32.totalorder %s223, 0
      %s226 = sadd.s32 %s225, 1
      %s227 = scalar_select %p224, %s225, %s226
      %p230 = pneg %p224
      %p231 = scmp.eq.s32.totalorder %s21, 1
      %p232 = por %p230, %p231
      %p233 = scmp.ne.s32.totalorder %s225, %s228
      %p234 = scmp.eq.s32.totalorder %s21, 0
      %p235 = por %p233, %p234
      %p236 = scmp.ne.s32.totalorder %s225, %s228
      %p237 = scmp.eq.s32.totalorder %s26, 1
      %p238 = por %p236, %p237
      %p239 = scmp.ne.s32.totalorder %s228, %s229
      %p240 = scmp.eq.s32.totalorder %s26, 0
      %p241 = por %p239, %p240
      %p242 = scmp.ne.s32.totalorder %s228, %s229
      %p243 = scmp.eq.s32.totalorder %s27, 1
      %p244 = por %p242, %p243
      %p246 = scmp.ne.s32.totalorder %s229, %s245
      %p247 = scmp.eq.s32.totalorder %s27, 0
      %p248 = por %p246, %p247
      %p249 = scmp.le.s32.totalorder 1, %s21
      %p250 = scmp.lt.s32.totalorder %s21, 3
      %p251 = pnand %p249, %p250
      %p252 = pneg %p251
      // Predicated region
      $region9: #{tpu_custom_call.1} parent=5 // pred_check
        _
      $region10: #{tpu_custom_call.1} parent=5 // pred_check_branch
        %254 = sbr.rel (%p251) target = $region12
      $region11: #{tpu_custom_call.1} parent=5 // pred_region
        %s255 = ssub.s32 %s21, 1
        // Predicated region
        $region13: #{tpu_custom_call.1} parent=11 // pred_check
          %p256 = pneg %p68
        $region14: #{tpu_custom_call.1} parent=11 // pred_check_branch
          %258 = sbr.rel (%p256) target = $region16
        $region15: #{tpu_custom_call.1} parent=11 // pred_region
          _
        $region16: #{tpu_custom_call.1} parent=11 // pred_fallthru
          _
        // Predicated region
        $region17: #{tpu_custom_call.1} parent=11 // pred_check
          %p259 = pneg %p89
        $region18: #{tpu_custom_call.1} parent=11 // pred_check_branch
          %261 = sbr.rel (%p259) target = $region20
        $region19: #{tpu_custom_call.1} parent=11 // pred_region
          _
        $region20: #{tpu_custom_call.1} parent=11 // pred_fallthru
          _
        // Predicated region
        $region21: #{tpu_custom_call.1} parent=11 // pred_check
          %p262 = pneg %p110
        $region22: #{tpu_custom_call.1} parent=11 // pred_check_branch
          %264 = sbr.rel (%p262) target = $region24
        $region23: #{tpu_custom_call.1} parent=11 // pred_region
          _
        $region24: #{tpu_custom_call.1} parent=11 // pred_fallthru
          _
        // Predicated region
        $region25: #{tpu_custom_call.1} parent=11 // pred_check
          %p265 = pneg %p131
        $region26: #{tpu_custom_call.1} parent=11 // pred_check_branch
          %267 = sbr.rel (%p265) target = $region28
        $region27: #{tpu_custom_call.1} parent=11 // pred_region
          _
        $region28: #{tpu_custom_call.1} parent=11 // pred_fallthru
          _
        // Predicated region
        $region29: #{tpu_custom_call.1} parent=11 // pred_check
          %p268 = pneg %p152
        $region30: #{tpu_custom_call.1} parent=11 // pred_check_branch
          %270 = sbr.rel (%p268) target = $region32
        $region31: #{tpu_custom_call.1} parent=11 // pred_region
          _
        $region32: #{tpu_custom_call.1} parent=11 // pred_fallthru
          _
        // Predicated region
        $region33: #{tpu_custom_call.1} parent=11 // pred_check
          %p271 = pneg %p173
        $region34: #{tpu_custom_call.1} parent=11 // pred_check_branch
          %273 = sbr.rel (%p271) target = $region36
        $region35: #{tpu_custom_call.1} parent=11 // pred_region
          _
        $region36: #{tpu_custom_call.1} parent=11 // pred_fallthru
          _
        // Predicated region
        $region37: #{tpu_custom_call.1} parent=11 // pred_check
          %p274 = pneg %p194
        $region38: #{tpu_custom_call.1} parent=11 // pred_check_branch
          %276 = sbr.rel (%p274) target = $region40
        $region39: #{tpu_custom_call.1} parent=11 // pred_region
          _
        $region40: #{tpu_custom_call.1} parent=11 // pred_fallthru
          _
        // Predicated region
        $region41: #{tpu_custom_call.1} parent=11 // pred_check
          %p277 = pneg %p215
        $region42: #{tpu_custom_call.1} parent=11 // pred_check_branch
          %279 = sbr.rel (%p277) target = $region44
        $region43: #{tpu_custom_call.1} parent=11 // pred_region
          _
        $region44: #{tpu_custom_call.1} parent=11 // pred_fallthru
          _
      $region12: #{tpu_custom_call.1} parent=5 // pred_fallthru
        _
      %p280 = scmp.lt.s32.totalorder %s21, 2
      // Predicated region
      $region45: #{tpu_custom_call.1} parent=5 // pred_check
        %p281 = pneg %p280
      $region46: #{tpu_custom_call.1} parent=5 // pred_check_branch
        %283 = sbr.rel (%p281) target = $region48
      $region47: #{tpu_custom_call.1} parent=5 // pred_region
        // Predicated region
        $region49: #{tpu_custom_call.1} parent=47 // pred_check
          %p284 = pneg %p41
        $region50: #{tpu_custom_call.1} parent=47 // pred_check_branch
          %286 = sbr.rel (%p284) target = $region52
        $region51: #{tpu_custom_call.1} parent=47 // pred_region
          %s287 = sand.u32 %s31, 1
          %s288 = scalar_lea.sflag [#allocation3], %s287
          %s289 = sand.u32 %s31, 1
          %s290 = smul.addr %s289, 96
          %s291 = scalar_lea.vmem [#allocation2], %s290
          %s292 = smul.u32 6, %s21
          %s294 = ssub.s32 1536, 1536
          %295 = vsyncadd %s288, %s294
          %s296 = smul.addr %s292, 128
          %s297 = scalar_lea.hbm %s0, %s296
          %s298 = sshll.u32 %s291, 4
          %s299 = int_to_ptr.vmem [resolvable:$true] %s298
          %304 = dma.hbm_to_vmem [thread:$0]  %s297, 1536, %s299, %s288, 1536, 768, 48
        $region52: #{tpu_custom_call.1} parent=47 // pred_fallthru
          _
      $region48: #{tpu_custom_call.1} parent=5 // pred_fallthru
        _
      %p305 = scmp.le.s32.totalorder 1, %s21
      %p306 = scmp.lt.s32.totalorder %s21, 3
      %p307 = pnand %p305, %p306
      %p308 = pneg %p307
      // Predicated region
      $region53: #{tpu_custom_call.1} parent=5 // pred_check
        _
      $region54: #{tpu_custom_call.1} parent=5 // pred_check_branch
        %310 = sbr.rel (%p307) target = $region56
      $region55: #{tpu_custom_call.1} parent=5 // pred_region
        %s311 = ssub.s32 %s21, 1
        %s312 = sand.u32 %s34, 1
        %s313 = scalar_lea.sflag [#allocation3], %s312
        %s314 = sand.u32 %s34, 1
        %s315 = smul.addr %s314, 96
        %s316 = scalar_lea.vmem [#allocation2], %s315
        // Predicated region
        $region57: #{tpu_custom_call.1} parent=55 // pred_check
          %p317 = pneg %p47
        $region58: #{tpu_custom_call.1} parent=55 // pred_check_branch
          %319 = sbr.rel (%p317) target = $region60
        $region59: #{tpu_custom_call.1} parent=55 // pred_region
          %320 = dma.done %s313, 1536
        $region60: #{tpu_custom_call.1} parent=55 // pred_fallthru
          _
        %s321 = sand.u32 %s34, 1
        %s322 = scalar_lea.sflag [#allocation3], %s321
        %s323 = sand.u32 %s34, 1
        %s324 = smul.addr %s323, 96
        %s325 = scalar_lea.vmem [#allocation2], %s324
        %p326 = pneg %p47
        %p327 = pneg %p44
        %p328 = pneg %p68
        %p329 = pneg %p65
        %p330 = pneg %p89
        %p331 = pneg %p86
        %p332 = pneg %p110
        %p333 = pneg %p107
        %p334 = pneg %p131
        %p335 = pneg %p128
        %p336 = pneg %p152
        %p337 = pneg %p149
        %p338 = pneg %p173
        %p339 = pneg %p170
        %p340 = pneg %p194
        %p341 = pneg %p191
        %p342 = pneg %p215
        %p343 = pneg %p212
        %p344 = pneg %p241
        %p345 = pneg %p238
        %s346 = sand.u32 %s228, 1
        %s347 = scalar_lea.sflag [#allocation4], %s346
        %s348 = sand.u32 %s228, 1
        %s349 = smul.addr %s348, 6
        %s350 = scalar_lea.vmem [#allocation5], %s349
        %s351 = smul.u32 6, %s26
        %s352 = smul.u32 6, %s26
        %v353 = vld [vmem:[%s316] sm:$0xff]
        %v354 = vld [vmem:[%s316 + $0x8] sm:$0xff]
        %v355 = vld [vmem:[%s316 + $0x10] sm:$0xff]
        %v356 = vld [vmem:[%s1] sm:$0xff]
        %v357 = vld [vmem:[%s1 + $0x8] sm:$0xff]
        %v358 = vld [vmem:[%s1 + $0x10] sm:$0xff]
        %v359 = vld [vmem:[%s1 + $0x18] sm:$0xff]
        %v360 = vld [vmem:[%s2] sm:$0xff]
        %v361 = vld [vmem:[%s2 + $0x8] sm:$0xff]
        %v362 = vld [vmem:[%s2 + $0x10] sm:$0xff]
        %v363 = vld [vmem:[%s2 + $0x18] sm:$0xff]
        %365 = vset.pattern.permute.xlu0 0
        %366 = vperm.xlu0 %365, %v360
        %v367 = vpop.permute.xlu0 %366
        %370 = vset.pattern.permute.xlu0 0
        %371 = vperm.xlu0 %370, %v361
        %v372 = vpop.permute.xlu0 %371
        %375 = vset.pattern.permute.xlu0 0
        %376 = vperm.xlu0 %375, %v362
        %v377 = vpop.permute.xlu0 %376
        %380 = vset.pattern.permute.xlu0 0
        %381 = vperm.xlu0 %380, %v363
        %v382 = vpop.permute.xlu0 %381
        %vm384 = vcmask 64512
        %v386 = vsel %vm384, %v356, 0
        %v389 = vsel %vm384, %v357, 0
        %v392 = vsel %vm384, %v358, 0
        %v395 = vsel %vm384, %v359, 0
        %397 = vmatprep.subr.mxu0 %v354
        %398 = vmatpush1.msra.mxu0 %v353
        %399 = vmatprep.subr.mxu0 0.0
        %400 = vmatpush1.msra.mxu0 0.0
        %401 = vmatprep.subr.mxu0 0.0
        %402 = vmatpush1.msra.mxu0 0.0
        %403 = vmatprep.subr.mxu0 0.0
        %404 = vmatpush1.msra.mxu0 0.0
        %405 = vmatprep.subr.mxu0 0.0
        %406 = vmatpush1.msra.mxu0 0.0
        %407 = vmatprep.subr.mxu0 0.0
        %408 = vmatpush1.msra.mxu0 0.0
        %409 = vmatprep.subr.mxu0 0.0
        %410 = vmatpush1.msra.mxu0 0.0
        %411 = vmatprep.subr.mxu0 0.0
        %412 = vmatpush1.msra.mxu0 0.0
        %413 = vmatprep.subr.mxu0 0.0
        %414 = vmatpush1.msra.mxu0 0.0
        %415 = vmatprep.subr.mxu0 0.0
        %416 = vmatpush1.msra.mxu0 0.0
        %417 = vmatprep.subr.mxu0 0.0
        %418 = vmatpush1.msra.mxu0 0.0
        %419 = vmatprep.subr.mxu0 0.0
        %420 = vmatpush1.msra.mxu0 0.0
        %421 = vmatprep.subr.mxu0 0.0
        %422 = vmatpush1.msra.mxu0 0.0
        %423 = vmatprep.subr.mxu0 0.0
        %424 = vmatpush1.msra.mxu0 0.0
        %425 = vmatprep.subr.mxu0 0.0
        %426 = vmatpush1.msra.mxu0 0.0
        %427 = vmatprep.subr.mxu0 0.0
        %428 = vmatpush1.msra.mxu0 0.0
        %429 = vmatprep.subr.mxu0 0.0
        %430 = vmatpush1.msra.mxu0 0.0
        %431 = vmatprep.subr.mxu0 0.0
        %432 = vmatpush1.msra.mxu0 0.0
        %433 = vmatprep.subr.mxu0 0.0
        %434 = vmatpush1.msra.mxu0 0.0
        %435 = vmatprep.subr.mxu0 0.0
        %436 = vmatpush1.msra.mxu0 0.0
        %437 = vmatprep.subr.mxu0 0.0
        %438 = vmatpush1.msra.mxu0 0.0
        %439 = vmatprep.subr.mxu0 0.0
        %440 = vmatpush1.msra.mxu0 0.0
        %441 = vmatprep.subr.mxu0 0.0
        %442 = vmatpush1.msra.mxu0 0.0
        %443 = vmatprep.subr.mxu0 0.0
        %444 = vmatpush1.msra.mxu0 0.0
        %445 = vmatprep.subr.mxu0 0.0
        %446 = vmatpush1.msra.mxu0 0.0
        %447 = vmatprep.subr.mxu0 0.0
        %448 = vmatpush1.msra.mxu0 0.0
        %449 = vmatprep.subr.mxu0 0.0
        %450 = vmatpush1.msra.mxu0 0.0
        %451 = vmatprep.subr.mxu0 0.0
        %452 = vmatpush1.msra.mxu0 0.0
        %453 = vmatprep.subr.mxu0 0.0
        %454 = vmatpush1.msra.mxu0 0.0
        %455 = vmatprep.subr.mxu0 0.0
        %456 = vmatpush1.msra.mxu0 0.0
        %457 = vmatprep.subr.mxu0 0.0
        %458 = vmatpush1.msra.mxu0 0.0
        %459 = vmatprep.subr.mxu0 0.0
        %460 = vmatpush1.msra.mxu0 0.0
        %461 = vmatprep.mubr.f32.mxu0 0.0
        %462 = vmatmul.mubr.f32.gmra.mrb[0].mxu0 %v386
        %v463 = vpop.f32.mrb[0].mxu0
        %v464 = vadd.f32 %v367, %v463
        %v465 = vpop.f32.mrb[0].mxu0
        %v466 = vadd.f32 %v367, %v465
        %467 = vmatprep.mubr.f32.mxu0 0.0
        %468 = vmatmul.mubr.f32.gmra.mrb[0].mxu0 %v389
        %v469 = vpop.f32.mrb[0].mxu0
        %v470 = vadd.f32 %v372, %v469
        %v471 = vpop.f32.mrb[0].mxu0
        %v472 = vadd.f32 %v372, %v471
        %473 = vmatprep.mubr.f32.mxu0 0.0
        %474 = vmatmul.mubr.f32.gmra.mrb[0].mxu0 %v392
        %v475 = vpop.f32.mrb[0].mxu0
        %v476 = vadd.f32 %v377, %v475
        %v477 = vpop.f32.mrb[0].mxu0
        %v478 = vadd.f32 %v377, %v477
        %479 = vmatprep.mubr.f32.mxu0 0.0
        %480 = vmatmul.mubr.f32.gmra.mrb[0].mxu0 %v395
        %v481 = vpop.f32.mrb[0].mxu0
        %v482 = vadd.f32 %v382, %v481
        %v483 = vpop.f32.mrb[0].mxu0
        %v484 = vadd.f32 %v382, %v483
        %485 = vdwg.mxu0
        %486 = vmatprep.subr.mxu0 0.0
        %487 = vmatpush1.msra.mxu0 %v355
        %488 = vmatprep.subr.mxu0 0.0
        %489 = vmatpush1.msra.mxu0 0.0
        %490 = vmatprep.subr.mxu0 0.0
        %491 = vmatpush1.msra.mxu0 0.0
        %492 = vmatprep.subr.mxu0 0.0
        %493 = vmatpush1.msra.mxu0 0.0
        %494 = vmatprep.subr.mxu0 0.0
        %495 = vmatpush1.msra.mxu0 0.0
        %496 = vmatprep.subr.mxu0 0.0
        %497 = vmatpush1.msra.mxu0 0.0
        %498 = vmatprep.subr.mxu0 0.0
        %499 = vmatpush1.msra.mxu0 0.0
        %500 = vmatprep.subr.mxu0 0.0
        %501 = vmatpush1.msra.mxu0 0.0
        %502 = vmatprep.subr.mxu0 0.0
        %503 = vmatpush1.msra.mxu0 0.0
        %504 = vmatprep.subr.mxu0 0.0
        %505 = vmatpush1.msra.mxu0 0.0
        %506 = vmatprep.subr.mxu0 0.0
        %507 = vmatpush1.msra.mxu0 0.0
        %508 = vmatprep.subr.mxu0 0.0
        %509 = vmatpush1.msra.mxu0 0.0
        %510 = vmatprep.subr.mxu0 0.0
        %511 = vmatpush1.msra.mxu0 0.0
        %512 = vmatprep.subr.mxu0 0.0
        %513 = vmatpush1.msra.mxu0 0.0
        %514 = vmatprep.subr.mxu0 0.0
        %515 = vmatpush1.msra.mxu0 0.0
        %516 = vmatprep.subr.mxu0 0.0
        %517 = vmatpush1.msra.mxu0 0.0
        %518 = vmatprep.subr.mxu0 0.0
        %519 = vmatpush1.msra.mxu0 0.0
        %520 = vmatprep.subr.mxu0 0.0
        %521 = vmatpush1.msra.mxu0 0.0
        %522 = vmatprep.subr.mxu0 0.0
        %523 = vmatpush1.msra.mxu0 0.0
        %524 = vmatprep.subr.mxu0 0.0
        %525 = vmatpush1.msra.mxu0 0.0
        %526 = vmatprep.subr.mxu0 0.0
        %527 = vmatpush1.msra.mxu0 0.0
        %528 = vmatprep.subr.mxu0 0.0
        %529 = vmatpush1.msra.mxu0 0.0
        %530 = vmatprep.subr.mxu0 0.0
        %531 = vmatpush1.msra.mxu0 0.0
        %532 = vmatprep.subr.mxu0 0.0
        %533 = vmatpush1.msra.mxu0 0.0
        %534 = vmatprep.subr.mxu0 0.0
        %535 = vmatpush1.msra.mxu0 0.0
        %536 = vmatprep.subr.mxu0 0.0
        %537 = vmatpush1.msra.mxu0 0.0
        %538 = vmatprep.subr.mxu0 0.0
        %539 = vmatpush1.msra.mxu0 0.0
        %540 = vmatprep.subr.mxu0 0.0
        %541 = vmatpush1.msra.mxu0 0.0
        %542 = vmatprep.subr.mxu0 0.0
        %543 = vmatpush1.msra.mxu0 0.0
        %544 = vmatprep.subr.mxu0 0.0
        %545 = vmatpush1.msra.mxu0 0.0
        %546 = vmatprep.subr.mxu0 0.0
        %547 = vmatpush1.msra.mxu0 0.0
        %548 = vmatprep.subr.mxu0 0.0
        %549 = vmatpush1.msra.mxu0 0.0
        %550 = vmatprep.mubr.f32.mxu0 0.0
        %551 = vmatmul.mubr.f32.gmra.mrb[0].mxu0 %v386
        %v552 = vpop.f32.mrb[0].mxu0
        %v553 = vadd.f32 %v367, %v552
        %v554 = vpop.f32.mrb[0].mxu0
        %555 = vmatprep.mubr.f32.mxu0 0.0
        %556 = vmatmul.mubr.f32.gmra.mrb[0].mxu0 %v389
        %v557 = vpop.f32.mrb[0].mxu0
        %v558 = vadd.f32 %v372, %v557
        %v559 = vpop.f32.mrb[0].mxu0
        %560 = vmatprep.mubr.f32.mxu0 0.0
        %561 = vmatmul.mubr.f32.gmra.mrb[0].mxu0 %v392
        %v562 = vpop.f32.mrb[0].mxu0
        %v563 = vadd.f32 %v377, %v562
        %v564 = vpop.f32.mrb[0].mxu0
        %565 = vmatprep.mubr.f32.mxu0 0.0
        %566 = vmatmul.mubr.f32.gmra.mrb[0].mxu0 %v395
        %v567 = vpop.f32.mrb[0].mxu0
        %v568 = vadd.f32 %v382, %v567
        %v569 = vpop.f32.mrb[0].mxu0
        %570 = vdwg.mxu0
        %v571 = vtanh.pop %v464
        %v572 = vtanh.pop %v466
        %v573 = vtanh.pop %v553
        %v574 = vtanh.pop %v470
        %v575 = vtanh.pop %v472
        %v576 = vtanh.pop %v558
        %v577 = vtanh.pop %v476
        %v578 = vtanh.pop %v478
        %v579 = vtanh.pop %v563
        %v580 = vtanh.pop %v482
        %v581 = vtanh.pop %v484
        %v582 = vtanh.pop %v568
        %v583 = vld [vmem:[%s3] sm:$0xff]
        %v584 = vld [vmem:[%s3 + $0x8] sm:$0xff]
        %v585 = vld [vmem:[%s3 + $0x10] sm:$0xff]
        %v586 = vld [vmem:[%s3 + $0x18] sm:$0xff]
        %v587 = vld [vmem:[%s4] sm:$0xff]
        %v588 = vld [vmem:[%s4 + $0x8] sm:$0xff]
        %v589 = vld [vmem:[%s4 + $0x10] sm:$0xff]
        %v590 = vld [vmem:[%s4 + $0x18] sm:$0xff]
        %592 = vset.pattern.permute.xlu0 0
        %593 = vperm.xlu0 %592, %v587
        %v594 = vpop.permute.xlu0 %593
        %597 = vset.pattern.permute.xlu0 0
        %598 = vperm.xlu0 %597, %v588
        %v599 = vpop.permute.xlu0 %598
        %602 = vset.pattern.permute.xlu0 0
        %603 = vperm.xlu0 %602, %v589
        %v604 = vpop.permute.xlu0 %603
        %607 = vset.pattern.permute.xlu0 0
        %608 = vperm.xlu0 %607, %v590
        %v609 = vpop.permute.xlu0 %608
        %vm611 = vcmask 261120
        %v613 = vsel %vm611, %v583, 0
        %v616 = vsel %vm611, %v584, 0
        %v619 = vsel %vm611, %v585, 0
        %v622 = vsel %vm611, %v586, 0
        %624 = vmatprep.subr.mxu0 %v572
        %625 = vmatpush1.msra.mxu0 %v571
        %626 = vmatprep.subr.mxu0 %v575
        %627 = vmatpush1.msra.mxu0 %v574
        %628 = vmatprep.subr.mxu0 %v578
        %629 = vmatpush1.msra.mxu0 %v577
        %630 = vmatprep.subr.mxu0 %v581
        %631 = vmatpush1.msra.mxu0 %v580
        %632 = vmatprep.subr.mxu0 0.0
        %633 = vmatpush1.msra.mxu0 0.0
        %634 = vmatprep.subr.mxu0 0.0
        %635 = vmatpush1.msra.mxu0 0.0
        %636 = vmatprep.subr.mxu0 0.0
        %637 = vmatpush1.msra.mxu0 0.0
        %638 = vmatprep.subr.mxu0 0.0
        %639 = vmatpush1.msra.mxu0 0.0
        %640 = vmatprep.subr.mxu0 0.0
        %641 = vmatpush1.msra.mxu0 0.0
        %642 = vmatprep.subr.mxu0 0.0
        %643 = vmatpush1.msra.mxu0 0.0
        %644 = vmatprep.subr.mxu0 0.0
        %645 = vmatpush1.msra.mxu0 0.0
        %646 = vmatprep.subr.mxu0 0.0
        %647 = vmatpush1.msra.mxu0 0.0
        %648 = vmatprep.subr.mxu0 0.0
        %649 = vmatpush1.msra.mxu0 0.0
        %650 = vmatprep.subr.mxu0 0.0
        %651 = vmatpush1.msra.mxu0 0.0
        %652 = vmatprep.subr.mxu0 0.0
        %653 = vmatpush1.msra.mxu0 0.0
        %654 = vmatprep.subr.mxu0 0.0
        %655 = vmatpush1.msra.mxu0 0.0
        %656 = vmatprep.subr.mxu0 0.0
        %657 = vmatpush1.msra.mxu0 0.0
        %658 = vmatprep.subr.mxu0 0.0
        %659 = vmatpush1.msra.mxu0 0.0
        %660 = vmatprep.subr.mxu0 0.0
        %661 = vmatpush1.msra.mxu0 0.0
        %662 = vmatprep.subr.mxu0 0.0
        %663 = vmatpush1.msra.mxu0 0.0
        %664 = vmatprep.subr.mxu0 0.0
        %665 = vmatpush1.msra.mxu0 0.0
        %666 = vmatprep.subr.mxu0 0.0
        %667 = vmatpush1.msra.mxu0 0.0
        %668 = vmatprep.subr.mxu0 0.0
        %669 = vmatpush1.msra.mxu0 0.0
        %670 = vmatprep.subr.mxu0 0.0
        %671 = vmatpush1.msra.mxu0 0.0
        %672 = vmatprep.subr.mxu0 0.0
        %673 = vmatpush1.msra.mxu0 0.0
        %674 = vmatprep.subr.mxu0 0.0
        %675 = vmatpush1.msra.mxu0 0.0
        %676 = vmatprep.subr.mxu0 0.0
        %677 = vmatpush1.msra.mxu0 0.0
        %678 = vmatprep.subr.mxu0 0.0
        %679 = vmatpush1.msra.mxu0 0.0
        %680 = vmatprep.subr.mxu0 0.0
        %681 = vmatpush1.msra.mxu0 0.0
        %682 = vmatprep.subr.mxu0 0.0
        %683 = vmatpush1.msra.mxu0 0.0
        %684 = vmatprep.subr.mxu0 0.0
        %685 = vmatpush1.msra.mxu0 0.0
        %686 = vmatprep.subr.mxu0 0.0
        %687 = vmatpush1.msra.mxu0 0.0
        %688 = vmatprep.mubr.f32.mxu0 0.0
        %689 = vmatmul.mubr.f32.gmra.mrb[0].mxu0 %v613
        %v690 = vpop.f32.mrb[0].mxu0
        %v691 = vadd.f32 %v594, %v690
        %v692 = vpop.f32.mrb[0].mxu0
        %v693 = vadd.f32 %v594, %v692
        %694 = vmatprep.mubr.f32.mxu0 0.0
        %695 = vmatmul.mubr.f32.gmra.mrb[0].mxu0 %v616
        %v696 = vpop.f32.mrb[0].mxu0
        %v697 = vadd.f32 %v599, %v696
        %v698 = vpop.f32.mrb[0].mxu0
        %v699 = vadd.f32 %v599, %v698
        %700 = vmatprep.mubr.f32.mxu0 0.0
        %701 = vmatmul.mubr.f32.gmra.mrb[0].mxu0 %v619
        %v702 = vpop.f32.mrb[0].mxu0
        %v703 = vadd.f32 %v604, %v702
        %v704 = vpop.f32.mrb[0].mxu0
        %v705 = vadd.f32 %v604, %v704
        %706 = vmatprep.mubr.f32.mxu0 0.0
        %707 = vmatmul.mubr.f32.gmra.mrb[0].mxu0 %v622
        %v708 = vpop.f32.mrb[0].mxu0
        %v709 = vadd.f32 %v609, %v708
        %v710 = vpop.f32.mrb[0].mxu0
        %v711 = vadd.f32 %v609, %v710
        %712 = vdwg.mxu0
        %713 = vmatprep.subr.mxu0 0.0
        %714 = vmatpush1.msra.mxu0 %v573
        %715 = vmatprep.subr.mxu0 0.0
        %716 = vmatpush1.msra.mxu0 %v576
        %717 = vmatprep.subr.mxu0 0.0
        %718 = vmatpush1.msra.mxu0 %v579
        %719 = vmatprep.subr.mxu0 0.0
        %720 = vmatpush1.msra.mxu0 %v582
        %721 = vmatprep.subr.mxu0 0.0
        %722 = vmatpush1.msra.mxu0 0.0
        %723 = vmatprep.subr.mxu0 0.0
        %724 = vmatpush1.msra.mxu0 0.0
        %725 = vmatprep.subr.mxu0 0.0
        %726 = vmatpush1.msra.mxu0 0.0
        %727 = vmatprep.subr.mxu0 0.0
        %728 = vmatpush1.msra.mxu0 0.0
        %729 = vmatprep.subr.mxu0 0.0
        %730 = vmatpush1.msra.mxu0 0.0
        %731 = vmatprep.subr.mxu0 0.0
        %732 = vmatpush1.msra.mxu0 0.0
        %733 = vmatprep.subr.mxu0 0.0
        %734 = vmatpush1.msra.mxu0 0.0
        %735 = vmatprep.subr.mxu0 0.0
        %736 = vmatpush1.msra.mxu0 0.0
        %737 = vmatprep.subr.mxu0 0.0
        %738 = vmatpush1.msra.mxu0 0.0
        %739 = vmatprep.subr.mxu0 0.0
        %740 = vmatpush1.msra.mxu0 0.0
        %741 = vmatprep.subr.mxu0 0.0
        %742 = vmatpush1.msra.mxu0 0.0
        %743 = vmatprep.subr.mxu0 0.0
        %744 = vmatpush1.msra.mxu0 0.0
        %745 = vmatprep.subr.mxu0 0.0
        %746 = vmatpush1.msra.mxu0 0.0
        %747 = vmatprep.subr.mxu0 0.0
        %748 = vmatpush1.msra.mxu0 0.0
        %749 = vmatprep.subr.mxu0 0.0
        %750 = vmatpush1.msra.mxu0 0.0
        %751 = vmatprep.subr.mxu0 0.0
        %752 = vmatpush1.msra.mxu0 0.0
        %753 = vmatprep.subr.mxu0 0.0
        %754 = vmatpush1.msra.mxu0 0.0
        %755 = vmatprep.subr.mxu0 0.0
        %756 = vmatpush1.msra.mxu0 0.0
        %757 = vmatprep.subr.mxu0 0.0
        %758 = vmatpush1.msra.mxu0 0.0
        %759 = vmatprep.subr.mxu0 0.0
        %760 = vmatpush1.msra.mxu0 0.0
        %761 = vmatprep.subr.mxu0 0.0
        %762 = vmatpush1.msra.mxu0 0.0
        %763 = vmatprep.subr.mxu0 0.0
        %764 = vmatpush1.msra.mxu0 0.0
        %765 = vmatprep.subr.mxu0 0.0
        %766 = vmatpush1.msra.mxu0 0.0
        %767 = vmatprep.subr.mxu0 0.0
        %768 = vmatpush1.msra.mxu0 0.0
        %769 = vmatprep.subr.mxu0 0.0
        %770 = vmatpush1.msra.mxu0 0.0
        %771 = vmatprep.subr.mxu0 0.0
        %772 = vmatpush1.msra.mxu0 0.0
        %773 = vmatprep.subr.mxu0 0.0
        %774 = vmatpush1.msra.mxu0 0.0
        %775 = vmatprep.subr.mxu0 0.0
        %776 = vmatpush1.msra.mxu0 0.0
        %777 = vmatprep.mubr.f32.mxu0 0.0
        %778 = vmatmul.mubr.f32.gmra.mrb[0].mxu0 %v613
        %v779 = vpop.f32.mrb[0].mxu0
        %v780 = vadd.f32 %v594, %v779
        %v781 = vpop.f32.mrb[0].mxu0
        %782 = vmatprep.mubr.f32.mxu0 0.0
        %783 = vmatmul.mubr.f32.gmra.mrb[0].mxu0 %v616
        %v784 = vpop.f32.mrb[0].mxu0
        %v785 = vadd.f32 %v599, %v784
        %v786 = vpop.f32.mrb[0].mxu0
        %787 = vmatprep.mubr.f32.mxu0 0.0
        %788 = vmatmul.mubr.f32.gmra.mrb[0].mxu0 %v619
        %v789 = vpop.f32.mrb[0].mxu0
        %v790 = vadd.f32 %v604, %v789
        %v791 = vpop.f32.mrb[0].mxu0
        %792 = vmatprep.mubr.f32.mxu0 0.0
        %793 = vmatmul.mubr.f32.gmra.mrb[0].mxu0 %v622
        %v794 = vpop.f32.mrb[0].mxu0
        %v795 = vadd.f32 %v609, %v794
        %v796 = vpop.f32.mrb[0].mxu0
        %797 = vdwg.mxu0
        %v798 = vtanh.pop %v691
        %v799 = vtanh.pop %v693
        %v800 = vtanh.pop %v780
        %v801 = vtanh.pop %v697
        %v802 = vtanh.pop %v699
        %v803 = vtanh.pop %v785
        %v804 = vtanh.pop %v703
        %v805 = vtanh.pop %v705
        %v806 = vtanh.pop %v790
        %v807 = vtanh.pop %v709
        %v808 = vtanh.pop %v711
        %v809 = vtanh.pop %v795
        %v810 = vld [vmem:[%s5] sm:$0xff]
        %v811 = vld [vmem:[%s5 + $0x8] sm:$0xff]
        %v812 = vld [vmem:[%s5 + $0x10] sm:$0xff]
        %v813 = vld [vmem:[%s5 + $0x18] sm:$0xff]
        %v814 = vld [vmem:[%s6] sm:$0xff]
        %v815 = vld [vmem:[%s6 + $0x8] sm:$0xff]
        %v816 = vld [vmem:[%s6 + $0x10] sm:$0xff]
        %v817 = vld [vmem:[%s6 + $0x18] sm:$0xff]
        %819 = vset.pattern.permute.xlu0 0
        %820 = vperm.xlu0 %819, %v814
        %v821 = vpop.permute.xlu0 %820
        %824 = vset.pattern.permute.xlu0 0
        %825 = vperm.xlu0 %824, %v815
        %v826 = vpop.permute.xlu0 %825
        %829 = vset.pattern.permute.xlu0 0
        %830 = vperm.xlu0 %829, %v816
        %v831 = vpop.permute.xlu0 %830
        %834 = vset.pattern.permute.xlu0 0
        %835 = vperm.xlu0 %834, %v817
        %v836 = vpop.permute.xlu0 %835
        %v839 = vsel %vm611, %v810, 0
        %v842 = vsel %vm611, %v811, 0
        %v845 = vsel %vm611, %v812, 0
        %v848 = vsel %vm611, %v813, 0
        %850 = vmatprep.subr.mxu0 %v799
        %851 = vmatpush1.msra.mxu0 %v798
        %852 = vmatprep.subr.mxu0 %v802
        %853 = vmatpush1.msra.mxu0 %v801
        %854 = vmatprep.subr.mxu0 %v805
        %855 = vmatpush1.msra.mxu0 %v804
        %856 = vmatprep.subr.mxu0 %v808
        %857 = vmatpush1.msra.mxu0 %v807
        %858 = vmatprep.subr.mxu0 0.0
        %859 = vmatpush1.msra.mxu0 0.0
        %860 = vmatprep.subr.mxu0 0.0
        %861 = vmatpush1.msra.mxu0 0.0
        %862 = vmatprep.subr.mxu0 0.0
        %863 = vmatpush1.msra.mxu0 0.0
        %864 = vmatprep.subr.mxu0 0.0
        %865 = vmatpush1.msra.mxu0 0.0
        %866 = vmatprep.subr.mxu0 0.0
        %867 = vmatpush1.msra.mxu0 0.0
        %868 = vmatprep.subr.mxu0 0.0
        %869 = vmatpush1.msra.mxu0 0.0
        %870 = vmatprep.subr.mxu0 0.0
        %871 = vmatpush1.msra.mxu0 0.0
        %872 = vmatprep.subr.mxu0 0.0
        %873 = vmatpush1.msra.mxu0 0.0
        %874 = vmatprep.subr.mxu0 0.0
        %875 = vmatpush1.msra.mxu0 0.0
        %876 = vmatprep.subr.mxu0 0.0
        %877 = vmatpush1.msra.mxu0 0.0
        %878 = vmatprep.subr.mxu0 0.0
        %879 = vmatpush1.msra.mxu0 0.0
        %880 = vmatprep.subr.mxu0 0.0
        %881 = vmatpush1.msra.mxu0 0.0
        %882 = vmatprep.subr.mxu0 0.0
        %883 = vmatpush1.msra.mxu0 0.0
        %884 = vmatprep.subr.mxu0 0.0
        %885 = vmatpush1.msra.mxu0 0.0
        %886 = vmatprep.subr.mxu0 0.0
        %887 = vmatpush1.msra.mxu0 0.0
        %888 = vmatprep.subr.mxu0 0.0
        %889 = vmatpush1.msra.mxu0 0.0
        %890 = vmatprep.subr.mxu0 0.0
        %891 = vmatpush1.msra.mxu0 0.0
        %892 = vmatprep.subr.mxu0 0.0
        %893 = vmatpush1.msra.mxu0 0.0
        %894 = vmatprep.subr.mxu0 0.0
        %895 = vmatpush1.msra.mxu0 0.0
        %896 = vmatprep.subr.mxu0 0.0
        %897 = vmatpush1.msra.mxu0 0.0
        %898 = vmatprep.subr.mxu0 0.0
        %899 = vmatpush1.msra.mxu0 0.0
        %900 = vmatprep.subr.mxu0 0.0
        %901 = vmatpush1.msra.mxu0 0.0
        %902 = vmatprep.subr.mxu0 0.0
        %903 = vmatpush1.msra.mxu0 0.0
        %904 = vmatprep.subr.mxu0 0.0
        %905 = vmatpush1.msra.mxu0 0.0
        %906 = vmatprep.subr.mxu0 0.0
        %907 = vmatpush1.msra.mxu0 0.0
        %908 = vmatprep.subr.mxu0 0.0
        %909 = vmatpush1.msra.mxu0 0.0
        %910 = vmatprep.subr.mxu0 0.0
        %911 = vmatpush1.msra.mxu0 0.0
        %912 = vmatprep.subr.mxu0 0.0
        %913 = vmatpush1.msra.mxu0 0.0
        %914 = vmatprep.mubr.f32.mxu0 0.0
        %915 = vmatmul.mubr.f32.gmra.mrb[0].mxu0 %v839
        %v916 = vpop.f32.mrb[0].mxu0
        %v917 = vadd.f32 %v821, %v916
        %v918 = vpop.f32.mrb[0].mxu0
        %v919 = vadd.f32 %v821, %v918
        %920 = vmatprep.mubr.f32.mxu0 0.0
        %921 = vmatmul.mubr.f32.gmra.mrb[0].mxu0 %v842
        %v922 = vpop.f32.mrb[0].mxu0
        %v923 = vadd.f32 %v826, %v922
        %v924 = vpop.f32.mrb[0].mxu0
        %v925 = vadd.f32 %v826, %v924
        %926 = vmatprep.mubr.f32.mxu0 0.0
        %927 = vmatmul.mubr.f32.gmra.mrb[0].mxu0 %v845
        %v928 = vpop.f32.mrb[0].mxu0
        %v929 = vadd.f32 %v831, %v928
        %v930 = vpop.f32.mrb[0].mxu0
        %v931 = vadd.f32 %v831, %v930
        %932 = vmatprep.mubr.f32.mxu0 0.0
        %933 = vmatmul.mubr.f32.gmra.mrb[0].mxu0 %v848
        %v934 = vpop.f32.mrb[0].mxu0
        %v935 = vadd.f32 %v836, %v934
        %v936 = vpop.f32.mrb[0].mxu0
        %v937 = vadd.f32 %v836, %v936
        %938 = vdwg.mxu0
        %939 = vmatprep.subr.mxu0 0.0
        %940 = vmatpush1.msra.mxu0 %v800
        %941 = vmatprep.subr.mxu0 0.0
        %942 = vmatpush1.msra.mxu0 %v803
        %943 = vmatprep.subr.mxu0 0.0
        %944 = vmatpush1.msra.mxu0 %v806
        %945 = vmatprep.subr.mxu0 0.0
        %946 = vmatpush1.msra.mxu0 %v809
        %947 = vmatprep.subr.mxu0 0.0
        %948 = vmatpush1.msra.mxu0 0.0
        %949 = vmatprep.subr.mxu0 0.0
        %950 = vmatpush1.msra.mxu0 0.0
        %951 = vmatprep.subr.mxu0 0.0
        %952 = vmatpush1.msra.mxu0 0.0
        %953 = vmatprep.subr.mxu0 0.0
        %954 = vmatpush1.msra.mxu0 0.0
        %955 = vmatprep.subr.mxu0 0.0
        %956 = vmatpush1.msra.mxu0 0.0
        %957 = vmatprep.subr.mxu0 0.0
        %958 = vmatpush1.msra.mxu0 0.0
        %959 = vmatprep.subr.mxu0 0.0
        %960 = vmatpush1.msra.mxu0 0.0
        %961 = vmatprep.subr.mxu0 0.0
        %962 = vmatpush1.msra.mxu0 0.0
        %963 = vmatprep.subr.mxu0 0.0
        %964 = vmatpush1.msra.mxu0 0.0
        %965 = vmatprep.subr.mxu0 0.0
        %966 = vmatpush1.msra.mxu0 0.0
        %967 = vmatprep.subr.mxu0 0.0
        %968 = vmatpush1.msra.mxu0 0.0
        %969 = vmatprep.subr.mxu0 0.0
        %970 = vmatpush1.msra.mxu0 0.0
        %971 = vmatprep.subr.mxu0 0.0
        %972 = vmatpush1.msra.mxu0 0.0
        %973 = vmatprep.subr.mxu0 0.0
        %974 = vmatpush1.msra.mxu0 0.0
        %975 = vmatprep.subr.mxu0 0.0
        %976 = vmatpush1.msra.mxu0 0.0
        %977 = vmatprep.subr.mxu0 0.0
        %978 = vmatpush1.msra.mxu0 0.0
        %979 = vmatprep.subr.mxu0 0.0
        %980 = vmatpush1.msra.mxu0 0.0
        %981 = vmatprep.subr.mxu0 0.0
        %982 = vmatpush1.msra.mxu0 0.0
        %983 = vmatprep.subr.mxu0 0.0
        %984 = vmatpush1.msra.mxu0 0.0
        %985 = vmatprep.subr.mxu0 0.0
        %986 = vmatpush1.msra.mxu0 0.0
        %987 = vmatprep.subr.mxu0 0.0
        %988 = vmatpush1.msra.mxu0 0.0
        %989 = vmatprep.subr.mxu0 0.0
        %990 = vmatpush1.msra.mxu0 0.0
        %991 = vmatprep.subr.mxu0 0.0
        %992 = vmatpush1.msra.mxu0 0.0
        %993 = vmatprep.subr.mxu0 0.0
        %994 = vmatpush1.msra.mxu0 0.0
        %995 = vmatprep.subr.mxu0 0.0
        %996 = vmatpush1.msra.mxu0 0.0
        %997 = vmatprep.subr.mxu0 0.0
        %998 = vmatpush1.msra.mxu0 0.0
        %999 = vmatprep.subr.mxu0 0.0
        %1000 = vmatpush1.msra.mxu0 0.0
        %1001 = vmatprep.subr.mxu0 0.0
        %1002 = vmatpush1.msra.mxu0 0.0
        %1003 = vmatprep.mubr.f32.mxu0 0.0
        %1004 = vmatmul.mubr.f32.gmra.mrb[0].mxu0 %v839
        %v1005 = vpop.f32.mrb[0].mxu0
        %v1006 = vadd.f32 %v821, %v1005
        %v1007 = vpop.f32.mrb[0].mxu0
        %1008 = vmatprep.mubr.f32.mxu0 0.0
        %1009 = vmatmul.mubr.f32.gmra.mrb[0].mxu0 %v842
        %v1010 = vpop.f32.mrb[0].mxu0
        %v1011 = vadd.f32 %v826, %v1010
        %v1012 = vpop.f32.mrb[0].mxu0
        %1013 = vmatprep.mubr.f32.mxu0 0.0
        %1014 = vmatmul.mubr.f32.gmra.mrb[0].mxu0 %v845
        %v1015 = vpop.f32.mrb[0].mxu0
        %v1016 = vadd.f32 %v831, %v1015
        %v1017 = vpop.f32.mrb[0].mxu0
        %1018 = vmatprep.mubr.f32.mxu0 0.0
        %1019 = vmatmul.mubr.f32.gmra.mrb[0].mxu0 %v848
        %v1020 = vpop.f32.mrb[0].mxu0
        %v1021 = vadd.f32 %v836, %v1020
        %v1022 = vpop.f32.mrb[0].mxu0
        %1023 = vdwg.mxu0
        %v1024 = vtanh.pop %v917
        %v1025 = vtanh.pop %v919
        %v1026 = vtanh.pop %v1006
        %v1027 = vtanh.pop %v923
        %v1028 = vtanh.pop %v925
        %v1029 = vtanh.pop %v1011
        %v1030 = vtanh.pop %v929
        %v1031 = vtanh.pop %v931
        %v1032 = vtanh.pop %v1016
        %v1033 = vtanh.pop %v935
        %v1034 = vtanh.pop %v937
        %v1035 = vtanh.pop %v1021
        %v1036 = vld [vmem:[%s7] sm:$0x1f]
        %v1037 = vld [vmem:[%s8] sm:$0x1f]
        %1039 = vset.pattern.permute.xlu0 0
        %1040 = vperm.xlu0 %1039, %v1037
        %v1041 = vpop.permute.xlu0 %1040
        %v1044 = vsel %vm611, %v1036, 0
        %1046 = vmatprep.subr.mxu0 %v1025
        %1047 = vmatpush1.msra.mxu0 %v1024
        %1048 = vmatprep.subr.mxu0 %v1028
        %1049 = vmatpush1.msra.mxu0 %v1027
        %1050 = vmatprep.subr.mxu0 %v1031
        %1051 = vmatpush1.msra.mxu0 %v1030
        %1052 = vmatprep.subr.mxu0 %v1034
        %1053 = vmatpush1.msra.mxu0 %v1033
        %1054 = vmatprep.subr.mxu0 0.0
        %1055 = vmatpush1.msra.mxu0 0.0
        %1056 = vmatprep.subr.mxu0 0.0
        %1057 = vmatpush1.msra.mxu0 0.0
        %1058 = vmatprep.subr.mxu0 0.0
        %1059 = vmatpush1.msra.mxu0 0.0
        %1060 = vmatprep.subr.mxu0 0.0
        %1061 = vmatpush1.msra.mxu0 0.0
        %1062 = vmatprep.subr.mxu0 0.0
        %1063 = vmatpush1.msra.mxu0 0.0
        %1064 = vmatprep.subr.mxu0 0.0
        %1065 = vmatpush1.msra.mxu0 0.0
        %1066 = vmatprep.subr.mxu0 0.0
        %1067 = vmatpush1.msra.mxu0 0.0
        %1068 = vmatprep.subr.mxu0 0.0
        %1069 = vmatpush1.msra.mxu0 0.0
        %1070 = vmatprep.subr.mxu0 0.0
        %1071 = vmatpush1.msra.mxu0 0.0
        %1072 = vmatprep.subr.mxu0 0.0
        %1073 = vmatpush1.msra.mxu0 0.0
        %1074 = vmatprep.subr.mxu0 0.0
        %1075 = vmatpush1.msra.mxu0 0.0
        %1076 = vmatprep.subr.mxu0 0.0
        %1077 = vmatpush1.msra.mxu0 0.0
        %1078 = vmatprep.subr.mxu0 0.0
        %1079 = vmatpush1.msra.mxu0 0.0
        %1080 = vmatprep.subr.mxu0 0.0
        %1081 = vmatpush1.msra.mxu0 0.0
        %1082 = vmatprep.subr.mxu0 0.0
        %1083 = vmatpush1.msra.mxu0 0.0
        %1084 = vmatprep.subr.mxu0 0.0
        %1085 = vmatpush1.msra.mxu0 0.0
        %1086 = vmatprep.subr.mxu0 0.0
        %1087 = vmatpush1.msra.mxu0 0.0
        %1088 = vmatprep.subr.mxu0 0.0
        %1089 = vmatpush1.msra.mxu0 0.0
        %1090 = vmatprep.subr.mxu0 0.0
        %1091 = vmatpush1.msra.mxu0 0.0
        %1092 = vmatprep.subr.mxu0 0.0
        %1093 = vmatpush1.msra.mxu0 0.0
        %1094 = vmatprep.subr.mxu0 0.0
        %1095 = vmatpush1.msra.mxu0 0.0
        %1096 = vmatprep.subr.mxu0 0.0
        %1097 = vmatpush1.msra.mxu0 0.0
        %1098 = vmatprep.subr.mxu0 0.0
        %1099 = vmatpush1.msra.mxu0 0.0
        %1100 = vmatprep.subr.mxu0 0.0
        %1101 = vmatpush1.msra.mxu0 0.0
        %1102 = vmatprep.subr.mxu0 0.0
        %1103 = vmatpush1.msra.mxu0 0.0
        %1104 = vmatprep.subr.mxu0 0.0
        %1105 = vmatpush1.msra.mxu0 0.0
        %1106 = vmatprep.subr.mxu0 0.0
        %1107 = vmatpush1.msra.mxu0 0.0
        %1108 = vmatprep.subr.mxu0 0.0
        %1109 = vmatpush1.msra.mxu0 0.0
        %1110 = vmatprep.mubr.f32.mxu0 0.0
        %1111 = vmatmul.mubr.f32.gmra.mrb[0].mxu0 %v1044
        %v1112 = vpop.f32.mrb[0].mxu0
        %v1113 = vadd.f32 %v1041, %v1112
        %v1114 = vpop.f32.mrb[0].mxu0
        %v1115 = vadd.f32 %v1041, %v1114
        %1116 = vdwg.mxu0
        %1117 = vmatprep.subr.mxu0 0.0
        %1118 = vmatpush1.msra.mxu0 %v1026
        %1119 = vmatprep.subr.mxu0 0.0
        %1120 = vmatpush1.msra.mxu0 %v1029
        %1121 = vmatprep.subr.mxu0 0.0
        %1122 = vmatpush1.msra.mxu0 %v1032
        %1123 = vmatprep.subr.mxu0 0.0
        %1124 = vmatpush1.msra.mxu0 %v1035
        %1125 = vmatprep.subr.mxu0 0.0
        %1126 = vmatpush1.msra.mxu0 0.0
        %1127 = vmatprep.subr.mxu0 0.0
        %1128 = vmatpush1.msra.mxu0 0.0
        %1129 = vmatprep.subr.mxu0 0.0
        %1130 = vmatpush1.msra.mxu0 0.0
        %1131 = vmatprep.subr.mxu0 0.0
        %1132 = vmatpush1.msra.mxu0 0.0
        %1133 = vmatprep.subr.mxu0 0.0
        %1134 = vmatpush1.msra.mxu0 0.0
        %1135 = vmatprep.subr.mxu0 0.0
        %1136 = vmatpush1.msra.mxu0 0.0
        %1137 = vmatprep.subr.mxu0 0.0
        %1138 = vmatpush1.msra.mxu0 0.0
        %1139 = vmatprep.subr.mxu0 0.0
        %1140 = vmatpush1.msra.mxu0 0.0
        %1141 = vmatprep.subr.mxu0 0.0
        %1142 = vmatpush1.msra.mxu0 0.0
        %1143 = vmatprep.subr.mxu0 0.0
        %1144 = vmatpush1.msra.mxu0 0.0
        %1145 = vmatprep.subr.mxu0 0.0
        %1146 = vmatpush1.msra.mxu0 0.0
        %1147 = vmatprep.subr.mxu0 0.0
        %1148 = vmatpush1.msra.mxu0 0.0
        %1149 = vmatprep.subr.mxu0 0.0
        %1150 = vmatpush1.msra.mxu0 0.0
        %1151 = vmatprep.subr.mxu0 0.0
        %1152 = vmatpush1.msra.mxu0 0.0
        %1153 = vmatprep.subr.mxu0 0.0
        %1154 = vmatpush1.msra.mxu0 0.0
        %1155 = vmatprep.subr.mxu0 0.0
        %1156 = vmatpush1.msra.mxu0 0.0
        %1157 = vmatprep.subr.mxu0 0.0
        %1158 = vmatpush1.msra.mxu0 0.0
        %1159 = vmatprep.subr.mxu0 0.0
        %1160 = vmatpush1.msra.mxu0 0.0
        %1161 = vmatprep.subr.mxu0 0.0
        %1162 = vmatpush1.msra.mxu0 0.0
        %1163 = vmatprep.subr.mxu0 0.0
        %1164 = vmatpush1.msra.mxu0 0.0
        %1165 = vmatprep.subr.mxu0 0.0
        %1166 = vmatpush1.msra.mxu0 0.0
        %1167 = vmatprep.subr.mxu0 0.0
        %1168 = vmatpush1.msra.mxu0 0.0
        %1169 = vmatprep.subr.mxu0 0.0
        %1170 = vmatpush1.msra.mxu0 0.0
        %1171 = vmatprep.subr.mxu0 0.0
        %1172 = vmatpush1.msra.mxu0 0.0
        %1173 = vmatprep.subr.mxu0 0.0
        %1174 = vmatpush1.msra.mxu0 0.0
        %1175 = vmatprep.subr.mxu0 0.0
        %1176 = vmatpush1.msra.mxu0 0.0
        %1177 = vmatprep.subr.mxu0 0.0
        %1178 = vmatpush1.msra.mxu0 0.0
        %1179 = vmatprep.subr.mxu0 0.0
        %1180 = vmatpush1.msra.mxu0 0.0
        %1181 = vmatprep.mubr.f32.mxu0 0.0
        %1182 = vmatmul.mubr.f32.gmra.mrb[0].mxu0 %v1044
        %v1183 = vpop.f32.mrb[0].mxu0
        %v1184 = vadd.f32 %v1041, %v1183
        %v1185 = vpop.f32.mrb[0].mxu0
        %1186 = vdwg.mxu0
        %v1187 = vtanh.pop %v1113
        %v1188 = vtanh.pop %v1115
        %v1189 = vtanh.pop %v1184
        %v1190 = vld [vmem:[%s316 + $0x30] sm:$0xf]
        %v1191 = vld [vmem:[%s316 + $0x38] sm:$0xf]
        %v1192 = vld [vmem:[%s316 + $0x40] sm:$0xf]
        %v1193 = vmul.f32 %v1190, 2.0
        %v1194 = vmul.f32 %v1191, 2.0
        %v1195 = vmul.f32 %v1192, 2.0
        %v1199 = vrot.slane %v1187, 1
        %v1200 = vrot.slane %v1188, 1
        %v1201 = vrot.slane %v1189, 1
        %v1205 = vmul.f32 %v1193, %v1199
        %v1206 = vmul.f32 %v1194, %v1200
        %v1207 = vmul.f32 %v1195, %v1201
        %v1208 = vadd.f32 %v1187, %v1205
        %v1209 = vadd.f32 %v1188, %v1206
        %v1210 = vadd.f32 %v1189, %v1207
        %v1211 = vmul.f32 %v1190, %v1199
        %v1212 = vmul.f32 %v1191, %v1200
        %v1213 = vmul.f32 %v1192, %v1201
        %v1217 = vrot.slane %v1211, 1
        %v1218 = vrot.slane %v1212, 1
        %v1219 = vrot.slane %v1213, 1
        %v1223 = vadd.f32 %v1208, %v1217
        %v1224 = vadd.f32 %v1209, %v1218
        %v1225 = vadd.f32 %v1210, %v1219
        %v1226 = vmul.f32 %v1190, 10.0
        %v1227 = vmul.f32 %v1191, 10.0
        %v1228 = vmul.f32 %v1192, 10.0
        %v1229 = vmul.f32 %v1226, %v1199
        %v1230 = vmul.f32 %v1227, %v1200
        %v1231 = vmul.f32 %v1228, %v1201
        %v1235 = vrot.slane %v1229, 2
        %v1236 = vrot.slane %v1230, 2
        %v1237 = vrot.slane %v1231, 2
        %v1241 = vadd.f32 %v1223, %v1235
        %v1242 = vadd.f32 %v1224, %v1236
        %v1243 = vadd.f32 %v1225, %v1237
        %v1244 = vrot.slane %v1211, 3
        %v1245 = vrot.slane %v1212, 3
        %v1246 = vrot.slane %v1213, 3
        %v1250 = vadd.f32 %v1241, %v1244
        %v1251 = vadd.f32 %v1242, %v1245
        %v1252 = vadd.f32 %v1243, %v1246
        %v1256 = vcombine.low %v1250, %v1251
        %v1258 = vunpack.c.l.s4 1966171168
        %v1259 = vunpack.c.0.s8 %v1258
        %v1260 = vlaneseq
        %v1261 = vshrl.u32 %v1260, 7
        %v1262 = vsub.s32 %v1259, %v1261
        %v1263 = vrot.slane %v1256, %v1262
        %v1265 = vunpack.c.l.s4 1966171168
        %v1266 = vunpack.c.0.s8 %v1265
        %v1267 = vlaneseq
        %v1268 = vshrl.u32 %v1267, 7
        %v1269 = vsub.s32 %v1266, %v1268
        %v1270 = vrot.slane %v1252, %v1269
        %v1271 = vcombine.low %v1263, %v1270
        %v1273 = vunpack.c.l.s4 1966171168
        %v1274 = vunpack.c.0.s8 %v1273
        %v1275 = vlaneseq
        %v1276 = vshrl.u32 %v1275, 7
        %v1277 = vsub.s32 %v1274, %v1276
        %v1278 = vrot.slane %v1271, %v1277
        %v1280 = vlaneseq
        %vm1281 = vcmp.ge.s32.totalorder %v1280, 0
        %vm1282 = vcmp.lt.s32.totalorder %v1280, 384
        %vm1283 = vmand %vm1281, %vm1282
        %1284 = vst.msk [vmem:[%s350] sm:$0x7] %vm1283, %v1278
        %v1285 = vld [vmem:[%s316 + $0x18] sm:$0xff]
        %v1286 = vld [vmem:[%s316 + $0x20] sm:$0xff]
        %v1287 = vld [vmem:[%s316 + $0x28] sm:$0xff]
        %v1288 = vld [vmem:[%s1] sm:$0xff]
        %v1289 = vld [vmem:[%s1 + $0x8] sm:$0xff]
        %v1290 = vld [vmem:[%s1 + $0x10] sm:$0xff]
        %v1291 = vld [vmem:[%s1 + $0x18] sm:$0xff]
        %v1292 = vld [vmem:[%s2] sm:$0xff]
        %v1293 = vld [vmem:[%s2 + $0x8] sm:$0xff]
        %v1294 = vld [vmem:[%s2 + $0x10] sm:$0xff]
        %v1295 = vld [vmem:[%s2 + $0x18] sm:$0xff]
        %1297 = vset.pattern.permute.xlu0 0
        %1298 = vperm.xlu0 %1297, %v1292
        %v1299 = vpop.permute.xlu0 %1298
        %1302 = vset.pattern.permute.xlu0 0
        %1303 = vperm.xlu0 %1302, %v1293
        %v1304 = vpop.permute.xlu0 %1303
        %1307 = vset.pattern.permute.xlu0 0
        %1308 = vperm.xlu0 %1307, %v1294
        %v1309 = vpop.permute.xlu0 %1308
        %1312 = vset.pattern.permute.xlu0 0
        %1313 = vperm.xlu0 %1312, %v1295
        %v1314 = vpop.permute.xlu0 %1313
        %v1317 = vsel %vm384, %v1288, 0
        %v1320 = vsel %vm384, %v1289, 0
        %v1323 = vsel %vm384, %v1290, 0
        %v1326 = vsel %vm384, %v1291, 0
        %1328 = vmatprep.subr.mxu0 %v1286
        %1329 = vmatpush1.msra.mxu0 %v1285
        %1330 = vmatprep.subr.mxu0 0.0
        %1331 = vmatpush1.msra.mxu0 0.0
        %1332 = vmatprep.subr.mxu0 0.0
        %1333 = vmatpush1.msra.mxu0 0.0
        %1334 = vmatprep.subr.mxu0 0.0
        %1335 = vmatpush1.msra.mxu0 0.0
        %1336 = vmatprep.subr.mxu0 0.0
        %1337 = vmatpush1.msra.mxu0 0.0
        %1338 = vmatprep.subr.mxu0 0.0
        %1339 = vmatpush1.msra.mxu0 0.0
        %1340 = vmatprep.subr.mxu0 0.0
        %1341 = vmatpush1.msra.mxu0 0.0
        %1342 = vmatprep.subr.mxu0 0.0
        %1343 = vmatpush1.msra.mxu0 0.0
        %1344 = vmatprep.subr.mxu0 0.0
        %1345 = vmatpush1.msra.mxu0 0.0
        %1346 = vmatprep.subr.mxu0 0.0
        %1347 = vmatpush1.msra.mxu0 0.0
        %1348 = vmatprep.subr.mxu0 0.0
        %1349 = vmatpush1.msra.mxu0 0.0
        %1350 = vmatprep.subr.mxu0 0.0
        %1351 = vmatpush1.msra.mxu0 0.0
        %1352 = vmatprep.subr.mxu0 0.0
        %1353 = vmatpush1.msra.mxu0 0.0
        %1354 = vmatprep.subr.mxu0 0.0
        %1355 = vmatpush1.msra.mxu0 0.0
        %1356 = vmatprep.subr.mxu0 0.0
        %1357 = vmatpush1.msra.mxu0 0.0
        %1358 = vmatprep.subr.mxu0 0.0
        %1359 = vmatpush1.msra.mxu0 0.0
        %1360 = vmatprep.subr.mxu0 0.0
        %1361 = vmatpush1.msra.mxu0 0.0
        %1362 = vmatprep.subr.mxu0 0.0
        %1363 = vmatpush1.msra.mxu0 0.0
        %1364 = vmatprep.subr.mxu0 0.0
        %1365 = vmatpush1.msra.mxu0 0.0
        %1366 = vmatprep.subr.mxu0 0.0
        %1367 = vmatpush1.msra.mxu0 0.0
        %1368 = vmatprep.subr.mxu0 0.0
        %1369 = vmatpush1.msra.mxu0 0.0
        %1370 = vmatprep.subr.mxu0 0.0
        %1371 = vmatpush1.msra.mxu0 0.0
        %1372 = vmatprep.subr.mxu0 0.0
        %1373 = vmatpush1.msra.mxu0 0.0
        %1374 = vmatprep.subr.mxu0 0.0
        %1375 = vmatpush1.msra.mxu0 0.0
        %1376 = vmatprep.subr.mxu0 0.0
        %1377 = vmatpush1.msra.mxu0 0.0
        %1378 = vmatprep.subr.mxu0 0.0
        %1379 = vmatpush1.msra.mxu0 0.0
        %1380 = vmatprep.subr.mxu0 0.0
        %1381 = vmatpush1.msra.mxu0 0.0
        %1382 = vmatprep.subr.mxu0 0.0
        %1383 = vmatpush1.msra.mxu0 0.0
        %1384 = vmatprep.subr.mxu0 0.0
        %1385 = vmatpush1.msra.mxu0 0.0
        %1386 = vmatprep.subr.mxu0 0.0
        %1387 = vmatpush1.msra.mxu0 0.0
        %1388 = vmatprep.subr.mxu0 0.0
        %1389 = vmatpush1.msra.mxu0 0.0
        %1390 = vmatprep.subr.mxu0 0.0
        %1391 = vmatpush1.msra.mxu0 0.0
        %1392 = vmatprep.mubr.f32.mxu0 0.0
        %1393 = vmatmul.mubr.f32.gmra.mrb[0].mxu0 %v1317
        %v1394 = vpop.f32.mrb[0].mxu0
        %v1395 = vadd.f32 %v1299, %v1394
        %v1396 = vpop.f32.mrb[0].mxu0
        %v1397 = vadd.f32 %v1299, %v1396
        %1398 = vmatprep.mubr.f32.mxu0 0.0
        %1399 = vmatmul.mubr.f32.gmra.mrb[0].mxu0 %v1320
        %v1400 = vpop.f32.mrb[0].mxu0
        %v1401 = vadd.f32 %v1304, %v1400
        %v1402 = vpop.f32.mrb[0].mxu0
        %v1403 = vadd.f32 %v1304, %v1402
        %1404 = vmatprep.mubr.f32.mxu0 0.0
        %1405 = vmatmul.mubr.f32.gmra.mrb[0].mxu0 %v1323
        %v1406 = vpop.f32.mrb[0].mxu0
        %v1407 = vadd.f32 %v1309, %v1406
        %v1408 = vpop.f32.mrb[0].mxu0
        %v1409 = vadd.f32 %v1309, %v1408
        %1410 = vmatprep.mubr.f32.mxu0 0.0
        %1411 = vmatmul.mubr.f32.gmra.mrb[0].mxu0 %v1326
        %v1412 = vpop.f32.mrb[0].mxu0
        %v1413 = vadd.f32 %v1314, %v1412
        %v1414 = vpop.f32.mrb[0].mxu0
        %v1415 = vadd.f32 %v1314, %v1414
        %1416 = vdwg.mxu0
        %1417 = vmatprep.subr.mxu0 0.0
        %1418 = vmatpush1.msra.mxu0 %v1287
        %1419 = vmatprep.subr.mxu0 0.0
        %1420 = vmatpush1.msra.mxu0 0.0
        %1421 = vmatprep.subr.mxu0 0.0
        %1422 = vmatpush1.msra.mxu0 0.0
        %1423 = vmatprep.subr.mxu0 0.0
        %1424 = vmatpush1.msra.mxu0 0.0
        %1425 = vmatprep.subr.mxu0 0.0
        %1426 = vmatpush1.msra.mxu0 0.0
        %1427 = vmatprep.subr.mxu0 0.0
        %1428 = vmatpush1.msra.mxu0 0.0
        %1429 = vmatprep.subr.mxu0 0.0
        %1430 = vmatpush1.msra.mxu0 0.0
        %1431 = vmatprep.subr.mxu0 0.0
        %1432 = vmatpush1.msra.mxu0 0.0
        %1433 = vmatprep.subr.mxu0 0.0
        %1434 = vmatpush1.msra.mxu0 0.0
        %1435 = vmatprep.subr.mxu0 0.0
        %1436 = vmatpush1.msra.mxu0 0.0
        %1437 = vmatprep.subr.mxu0 0.0
        %1438 = vmatpush1.msra.mxu0 0.0
        %1439 = vmatprep.subr.mxu0 0.0
        %1440 = vmatpush1.msra.mxu0 0.0
        %1441 = vmatprep.subr.mxu0 0.0
        %1442 = vmatpush1.msra.mxu0 0.0
        %1443 = vmatprep.subr.mxu0 0.0
        %1444 = vmatpush1.msra.mxu0 0.0
        %1445 = vmatprep.subr.mxu0 0.0
        %1446 = vmatpush1.msra.mxu0 0.0
        %1447 = vmatprep.subr.mxu0 0.0
        %1448 = vmatpush1.msra.mxu0 0.0
        %1449 = vmatprep.subr.mxu0 0.0
        %1450 = vmatpush1.msra.mxu0 0.0
        %1451 = vmatprep.subr.mxu0 0.0
        %1452 = vmatpush1.msra.mxu0 0.0
        %1453 = vmatprep.subr.mxu0 0.0
        %1454 = vmatpush1.msra.mxu0 0.0
        %1455 = vmatprep.subr.mxu0 0.0
        %1456 = vmatpush1.msra.mxu0 0.0
        %1457 = vmatprep.subr.mxu0 0.0
        %1458 = vmatpush1.msra.mxu0 0.0
        %1459 = vmatprep.subr.mxu0 0.0
        %1460 = vmatpush1.msra.mxu0 0.0
        %1461 = vmatprep.subr.mxu0 0.0
        %1462 = vmatpush1.msra.mxu0 0.0
        %1463 = vmatprep.subr.mxu0 0.0
        %1464 = vmatpush1.msra.mxu0 0.0
        %1465 = vmatprep.subr.mxu0 0.0
        %1466 = vmatpush1.msra.mxu0 0.0
        %1467 = vmatprep.subr.mxu0 0.0
        %1468 = vmatpush1.msra.mxu0 0.0
        %1469 = vmatprep.subr.mxu0 0.0
        %1470 = vmatpush1.msra.mxu0 0.0
        %1471 = vmatprep.subr.mxu0 0.0
        %1472 = vmatpush1.msra.mxu0 0.0
        %1473 = vmatprep.subr.mxu0 0.0
        %1474 = vmatpush1.msra.mxu0 0.0
        %1475 = vmatprep.subr.mxu0 0.0
        %1476 = vmatpush1.msra.mxu0 0.0
        %1477 = vmatprep.subr.mxu0 0.0
        %1478 = vmatpush1.msra.mxu0 0.0
        %1479 = vmatprep.subr.mxu0 0.0
        %1480 = vmatpush1.msra.mxu0 0.0
        %1481 = vmatprep.mubr.f32.mxu0 0.0
        %1482 = vmatmul.mubr.f32.gmra.mrb[0].mxu0 %v1317
        %v1483 = vpop.f32.mrb[0].mxu0
        %v1484 = vadd.f32 %v1299, %v1483
        %v1485 = vpop.f32.mrb[0].mxu0
        %1486 = vmatprep.mubr.f32.mxu0 0.0
        %1487 = vmatmul.mubr.f32.gmra.mrb[0].mxu0 %v1320
        %v1488 = vpop.f32.mrb[0].mxu0
        %v1489 = vadd.f32 %v1304, %v1488
        %v1490 = vpop.f32.mrb[0].mxu0
        %1491 = vmatprep.mubr.f32.mxu0 0.0
        %1492 = vmatmul.mubr.f32.gmra.mrb[0].mxu0 %v1323
        %v1493 = vpop.f32.mrb[0].mxu0
        %v1494 = vadd.f32 %v1309, %v1493
        %v1495 = vpop.f32.mrb[0].mxu0
        %1496 = vmatprep.mubr.f32.mxu0 0.0
        %1497 = vmatmul.mubr.f32.gmra.mrb[0].mxu0 %v1326
        %v1498 = vpop.f32.mrb[0].mxu0
        %v1499 = vadd.f32 %v1314, %v1498
        %v1500 = vpop.f32.mrb[0].mxu0
        %1501 = vdwg.mxu0
        %v1502 = vtanh.pop %v1395
        %v1503 = vtanh.pop %v1397
        %v1504 = vtanh.pop %v1484
        %v1505 = vtanh.pop %v1401
        %v1506 = vtanh.pop %v1403
        %v1507 = vtanh.pop %v1489
        %v1508 = vtanh.pop %v1407
        %v1509 = vtanh.pop %v1409
        %v1510 = vtanh.pop %v1494
        %v1511 = vtanh.pop %v1413
        %v1512 = vtanh.pop %v1415
        %v1513 = vtanh.pop %v1499
        %v1514 = vld [vmem:[%s3] sm:$0xff]
        %v1515 = vld [vmem:[%s3 + $0x8] sm:$0xff]
        %v1516 = vld [vmem:[%s3 + $0x10] sm:$0xff]
        %v1517 = vld [vmem:[%s3 + $0x18] sm:$0xff]
        %v1518 = vld [vmem:[%s4] sm:$0xff]
        %v1519 = vld [vmem:[%s4 + $0x8] sm:$0xff]
        %v1520 = vld [vmem:[%s4 + $0x10] sm:$0xff]
        %v1521 = vld [vmem:[%s4 + $0x18] sm:$0xff]
        %1523 = vset.pattern.permute.xlu0 0
        %1524 = vperm.xlu0 %1523, %v1518
        %v1525 = vpop.permute.xlu0 %1524
        %1528 = vset.pattern.permute.xlu0 0
        %1529 = vperm.xlu0 %1528, %v1519
        %v1530 = vpop.permute.xlu0 %1529
        %1533 = vset.pattern.permute.xlu0 0
        %1534 = vperm.xlu0 %1533, %v1520
        %v1535 = vpop.permute.xlu0 %1534
        %1538 = vset.pattern.permute.xlu0 0
        %1539 = vperm.xlu0 %1538, %v1521
        %v1540 = vpop.permute.xlu0 %1539
        %v1543 = vsel %vm611, %v1514, 0
        %v1546 = vsel %vm611, %v1515, 0
        %v1549 = vsel %vm611, %v1516, 0
        %v1552 = vsel %vm611, %v1517, 0
        %1554 = vmatprep.subr.mxu0 %v1503
        %1555 = vmatpush1.msra.mxu0 %v1502
        %1556 = vmatprep.subr.mxu0 %v1506
        %1557 = vmatpush1.msra.mxu0 %v1505
        %1558 = vmatprep.subr.mxu0 %v1509
        %1559 = vmatpush1.msra.mxu0 %v1508
        %1560 = vmatprep.subr.mxu0 %v1512
        %1561 = vmatpush1.msra.mxu0 %v1511
        %1562 = vmatprep.subr.mxu0 0.0
        %1563 = vmatpush1.msra.mxu0 0.0
        %1564 = vmatprep.subr.mxu0 0.0
        %1565 = vmatpush1.msra.mxu0 0.0
        %1566 = vmatprep.subr.mxu0 0.0
        %1567 = vmatpush1.msra.mxu0 0.0
        %1568 = vmatprep.subr.mxu0 0.0
        %1569 = vmatpush1.msra.mxu0 0.0
        %1570 = vmatprep.subr.mxu0 0.0
        %1571 = vmatpush1.msra.mxu0 0.0
        %1572 = vmatprep.subr.mxu0 0.0
        %1573 = vmatpush1.msra.mxu0 0.0
        %1574 = vmatprep.subr.mxu0 0.0
        %1575 = vmatpush1.msra.mxu0 0.0
        %1576 = vmatprep.subr.mxu0 0.0
        %1577 = vmatpush1.msra.mxu0 0.0
        %1578 = vmatprep.subr.mxu0 0.0
        %1579 = vmatpush1.msra.mxu0 0.0
        %1580 = vmatprep.subr.mxu0 0.0
        %1581 = vmatpush1.msra.mxu0 0.0
        %1582 = vmatprep.subr.mxu0 0.0
        %1583 = vmatpush1.msra.mxu0 0.0
        %1584 = vmatprep.subr.mxu0 0.0
        %1585 = vmatpush1.msra.mxu0 0.0
        %1586 = vmatprep.subr.mxu0 0.0
        %1587 = vmatpush1.msra.mxu0 0.0
        %1588 = vmatprep.subr.mxu0 0.0
        %1589 = vmatpush1.msra.mxu0 0.0
        %1590 = vmatprep.subr.mxu0 0.0
        %1591 = vmatpush1.msra.mxu0 0.0
        %1592 = vmatprep.subr.mxu0 0.0
        %1593 = vmatpush1.msra.mxu0 0.0
        %1594 = vmatprep.subr.mxu0 0.0
        %1595 = vmatpush1.msra.mxu0 0.0
        %1596 = vmatprep.subr.mxu0 0.0
        %1597 = vmatpush1.msra.mxu0 0.0
        %1598 = vmatprep.subr.mxu0 0.0
        %1599 = vmatpush1.msra.mxu0 0.0
        %1600 = vmatprep.subr.mxu0 0.0
        %1601 = vmatpush1.msra.mxu0 0.0
        %1602 = vmatprep.subr.mxu0 0.0
        %1603 = vmatpush1.msra.mxu0 0.0
        %1604 = vmatprep.subr.mxu0 0.0
        %1605 = vmatpush1.msra.mxu0 0.0
        %1606 = vmatprep.subr.mxu0 0.0
        %1607 = vmatpush1.msra.mxu0 0.0
        %1608 = vmatprep.subr.mxu0 0.0
        %1609 = vmatpush1.msra.mxu0 0.0
        %1610 = vmatprep.subr.mxu0 0.0
        %1611 = vmatpush1.msra.mxu0 0.0
        %1612 = vmatprep.subr.mxu0 0.0
        %1613 = vmatpush1.msra.mxu0 0.0
        %1614 = vmatprep.subr.mxu0 0.0
        %1615 = vmatpush1.msra.mxu0 0.0
        %1616 = vmatprep.subr.mxu0 0.0
        %1617 = vmatpush1.msra.mxu0 0.0
        %1618 = vmatprep.mubr.f32.mxu0 0.0
        %1619 = vmatmul.mubr.f32.gmra.mrb[0].mxu0 %v1543
        %v1620 = vpop.f32.mrb[0].mxu0
        %v1621 = vadd.f32 %v1525, %v1620
        %v1622 = vpop.f32.mrb[0].mxu0
        %v1623 = vadd.f32 %v1525, %v1622
        %1624 = vmatprep.mubr.f32.mxu0 0.0
        %1625 = vmatmul.mubr.f32.gmra.mrb[0].mxu0 %v1546
        %v1626 = vpop.f32.mrb[0].mxu0
        %v1627 = vadd.f32 %v1530, %v1626
        %v1628 = vpop.f32.mrb[0].mxu0
        %v1629 = vadd.f32 %v1530, %v1628
        %1630 = vmatprep.mubr.f32.mxu0 0.0
        %1631 = vmatmul.mubr.f32.gmra.mrb[0].mxu0 %v1549
        %v1632 = vpop.f32.mrb[0].mxu0
        %v1633 = vadd.f32 %v1535, %v1632
        %v1634 = vpop.f32.mrb[0].mxu0
        %v1635 = vadd.f32 %v1535, %v1634
        %1636 = vmatprep.mubr.f32.mxu0 0.0
        %1637 = vmatmul.mubr.f32.gmra.mrb[0].mxu0 %v1552
        %v1638 = vpop.f32.mrb[0].mxu0
        %v1639 = vadd.f32 %v1540, %v1638
        %v1640 = vpop.f32.mrb[0].mxu0
        %v1641 = vadd.f32 %v1540, %v1640
        %1642 = vdwg.mxu0
        %1643 = vmatprep.subr.mxu0 0.0
        %1644 = vmatpush1.msra.mxu0 %v1504
        %1645 = vmatprep.subr.mxu0 0.0
        %1646 = vmatpush1.msra.mxu0 %v1507
        %1647 = vmatprep.subr.mxu0 0.0
        %1648 = vmatpush1.msra.mxu0 %v1510
        %1649 = vmatprep.subr.mxu0 0.0
        %1650 = vmatpush1.msra.mxu0 %v1513
        %1651 = vmatprep.subr.mxu0 0.0
        %1652 = vmatpush1.msra.mxu0 0.0
        %1653 = vmatprep.subr.mxu0 0.0
        %1654 = vmatpush1.msra.mxu0 0.0
        %1655 = vmatprep.subr.mxu0 0.0
        %1656 = vmatpush1.msra.mxu0 0.0
        %1657 = vmatprep.subr.mxu0 0.0
        %1658 = vmatpush1.msra.mxu0 0.0
        %1659 = vmatprep.subr.mxu0 0.0
        %1660 = vmatpush1.msra.mxu0 0.0
        %1661 = vmatprep.subr.mxu0 0.0
        %1662 = vmatpush1.msra.mxu0 0.0
        %1663 = vmatprep.subr.mxu0 0.0
        %1664 = vmatpush1.msra.mxu0 0.0
        %1665 = vmatprep.subr.mxu0 0.0
        %1666 = vmatpush1.msra.mxu0 0.0
        %1667 = vmatprep.subr.mxu0 0.0
        %1668 = vmatpush1.msra.mxu0 0.0
        %1669 = vmatprep.subr.mxu0 0.0
        %1670 = vmatpush1.msra.mxu0 0.0
        %1671 = vmatprep.subr.mxu0 0.0
        %1672 = vmatpush1.msra.mxu0 0.0
        %1673 = vmatprep.subr.mxu0 0.0
        %1674 = vmatpush1.msra.mxu0 0.0
        %1675 = vmatprep.subr.mxu0 0.0
        %1676 = vmatpush1.msra.mxu0 0.0
        %1677 = vmatprep.subr.mxu0 0.0
        %1678 = vmatpush1.msra.mxu0 0.0
        %1679 = vmatprep.subr.mxu0 0.0
        %1680 = vmatpush1.msra.mxu0 0.0
        %1681 = vmatprep.subr.mxu0 0.0
        %1682 = vmatpush1.msra.mxu0 0.0
        %1683 = vmatprep.subr.mxu0 0.0
        %1684 = vmatpush1.msra.mxu0 0.0
        %1685 = vmatprep.subr.mxu0 0.0
        %1686 = vmatpush1.msra.mxu0 0.0
        %1687 = vmatprep.subr.mxu0 0.0
        %1688 = vmatpush1.msra.mxu0 0.0
        %1689 = vmatprep.subr.mxu0 0.0
        %1690 = vmatpush1.msra.mxu0 0.0
        %1691 = vmatprep.subr.mxu0 0.0
        %1692 = vmatpush1.msra.mxu0 0.0
        %1693 = vmatprep.subr.mxu0 0.0
        %1694 = vmatpush1.msra.mxu0 0.0
        %1695 = vmatprep.subr.mxu0 0.0
        %1696 = vmatpush1.msra.mxu0 0.0
        %1697 = vmatprep.subr.mxu0 0.0
        %1698 = vmatpush1.msra.mxu0 0.0
        %1699 = vmatprep.subr.mxu0 0.0
        %1700 = vmatpush1.msra.mxu0 0.0
        %1701 = vmatprep.subr.mxu0 0.0
        %1702 = vmatpush1.msra.mxu0 0.0
        %1703 = vmatprep.subr.mxu0 0.0
        %1704 = vmatpush1.msra.mxu0 0.0
        %1705 = vmatprep.subr.mxu0 0.0
        %1706 = vmatpush1.msra.mxu0 0.0
        %1707 = vmatprep.mubr.f32.mxu0 0.0
        %1708 = vmatmul.mubr.f32.gmra.mrb[0].mxu0 %v1543
        %v1709 = vpop.f32.mrb[0].mxu0
        %v1710 = vadd.f32 %v1525, %v1709
        %v1711 = vpop.f32.mrb[0].mxu0
        %1712 = vmatprep.mubr.f32.mxu0 0.0
        %1713 = vmatmul.mubr.f32.gmra.mrb[0].mxu0 %v1546
        %v1714 = vpop.f32.mrb[0].mxu0
        %v1715 = vadd.f32 %v1530, %v1714
        %v1716 = vpop.f32.mrb[0].mxu0
        %1717 = vmatprep.mubr.f32.mxu0 0.0
        %1718 = vmatmul.mubr.f32.gmra.mrb[0].mxu0 %v1549
        %v1719 = vpop.f32.mrb[0].mxu0
        %v1720 = vadd.f32 %v1535, %v1719
        %v1721 = vpop.f32.mrb[0].mxu0
        %1722 = vmatprep.mubr.f32.mxu0 0.0
        %1723 = vmatmul.mubr.f32.gmra.mrb[0].mxu0 %v1552
        %v1724 = vpop.f32.mrb[0].mxu0
        %v1725 = vadd.f32 %v1540, %v1724
        %v1726 = vpop.f32.mrb[0].mxu0
        %1727 = vdwg.mxu0
        %v1728 = vtanh.pop %v1621
        %v1729 = vtanh.pop %v1623
        %v1730 = vtanh.pop %v1710
        %v1731 = vtanh.pop %v1627
        %v1732 = vtanh.pop %v1629
        %v1733 = vtanh.pop %v1715
        %v1734 = vtanh.pop %v1633
        %v1735 = vtanh.pop %v1635
        %v1736 = vtanh.pop %v1720
        %v1737 = vtanh.pop %v1639
        %v1738 = vtanh.pop %v1641
        %v1739 = vtanh.pop %v1725
        %v1740 = vld [vmem:[%s5] sm:$0xff]
        %v1741 = vld [vmem:[%s5 + $0x8] sm:$0xff]
        %v1742 = vld [vmem:[%s5 + $0x10] sm:$0xff]
        %v1743 = vld [vmem:[%s5 + $0x18] sm:$0xff]
        %v1744 = vld [vmem:[%s6] sm:$0xff]
        %v1745 = vld [vmem:[%s6 + $0x8] sm:$0xff]
        %v1746 = vld [vmem:[%s6 + $0x10] sm:$0xff]
        %v1747 = vld [vmem:[%s6 + $0x18] sm:$0xff]
        %1749 = vset.pattern.permute.xlu0 0
        %1750 = vperm.xlu0 %1749, %v1744
        %v1751 = vpop.permute.xlu0 %1750
        %1754 = vset.pattern.permute.xlu0 0
        %1755 = vperm.xlu0 %1754, %v1745
        %v1756 = vpop.permute.xlu0 %1755
        %1759 = vset.pattern.permute.xlu0 0
        %1760 = vperm.xlu0 %1759, %v1746
        %v1761 = vpop.permute.xlu0 %1760
        %1764 = vset.pattern.permute.xlu0 0
        %1765 = vperm.xlu0 %1764, %v1747
        %v1766 = vpop.permute.xlu0 %1765
        %v1769 = vsel %vm611, %v1740, 0
        %v1772 = vsel %vm611, %v1741, 0
        %v1775 = vsel %vm611, %v1742, 0
        %v1778 = vsel %vm611, %v1743, 0
        %1780 = vmatprep.subr.mxu0 %v1729
        %1781 = vmatpush1.msra.mxu0 %v1728
        %1782 = vmatprep.subr.mxu0 %v1732
        %1783 = vmatpush1.msra.mxu0 %v1731
        %1784 = vmatprep.subr.mxu0 %v1735
        %1785 = vmatpush1.msra.mxu0 %v1734
        %1786 = vmatprep.subr.mxu0 %v1738
        %1787 = vmatpush1.msra.mxu0 %v1737
        %1788 = vmatprep.subr.mxu0 0.0
        %1789 = vmatpush1.msra.mxu0 0.0
        %1790 = vmatprep.subr.mxu0 0.0
        %1791 = vmatpush1.msra.mxu0 0.0
        %1792 = vmatprep.subr.mxu0 0.0
        %1793 = vmatpush1.msra.mxu0 0.0
        %1794 = vmatprep.subr.mxu0 0.0
        %1795 = vmatpush1.msra.mxu0 0.0
        %1796 = vmatprep.subr.mxu0 0.0
        %1797 = vmatpush1.msra.mxu0 0.0
        %1798 = vmatprep.subr.mxu0 0.0
        %1799 = vmatpush1.msra.mxu0 0.0
        %1800 = vmatprep.subr.mxu0 0.0
        %1801 = vmatpush1.msra.mxu0 0.0
        %1802 = vmatprep.subr.mxu0 0.0
        %1803 = vmatpush1.msra.mxu0 0.0
        %1804 = vmatprep.subr.mxu0 0.0
        %1805 = vmatpush1.msra.mxu0 0.0
        %1806 = vmatprep.subr.mxu0 0.0
        %1807 = vmatpush1.msra.mxu0 0.0
        %1808 = vmatprep.subr.mxu0 0.0
        %1809 = vmatpush1.msra.mxu0 0.0
        %1810 = vmatprep.subr.mxu0 0.0
        %1811 = vmatpush1.msra.mxu0 0.0
        %1812 = vmatprep.subr.mxu0 0.0
        %1813 = vmatpush1.msra.mxu0 0.0
        %1814 = vmatprep.subr.mxu0 0.0
        %1815 = vmatpush1.msra.mxu0 0.0
        %1816 = vmatprep.subr.mxu0 0.0
        %1817 = vmatpush1.msra.mxu0 0.0
        %1818 = vmatprep.subr.mxu0 0.0
        %1819 = vmatpush1.msra.mxu0 0.0
        %1820 = vmatprep.subr.mxu0 0.0
        %1821 = vmatpush1.msra.mxu0 0.0
        %1822 = vmatprep.subr.mxu0 0.0
        %1823 = vmatpush1.msra.mxu0 0.0
        %1824 = vmatprep.subr.mxu0 0.0
        %1825 = vmatpush1.msra.mxu0 0.0
        %1826 = vmatprep.subr.mxu0 0.0
        %1827 = vmatpush1.msra.mxu0 0.0
        %1828 = vmatprep.subr.mxu0 0.0
        %1829 = vmatpush1.msra.mxu0 0.0
        %1830 = vmatprep.subr.mxu0 0.0
        %1831 = vmatpush1.msra.mxu0 0.0
        %1832 = vmatprep.subr.mxu0 0.0
        %1833 = vmatpush1.msra.mxu0 0.0
        %1834 = vmatprep.subr.mxu0 0.0
        %1835 = vmatpush1.msra.mxu0 0.0
        %1836 = vmatprep.subr.mxu0 0.0
        %1837 = vmatpush1.msra.mxu0 0.0
        %1838 = vmatprep.subr.mxu0 0.0
        %1839 = vmatpush1.msra.mxu0 0.0
        %1840 = vmatprep.subr.mxu0 0.0
        %1841 = vmatpush1.msra.mxu0 0.0
        %1842 = vmatprep.subr.mxu0 0.0
        %1843 = vmatpush1.msra.mxu0 0.0
        %1844 = vmatprep.mubr.f32.mxu0 0.0
        %1845 = vmatmul.mubr.f32.gmra.mrb[0].mxu0 %v1769
        %v1846 = vpop.f32.mrb[0].mxu0
        %v1847 = vadd.f32 %v1751, %v1846
        %v1848 = vpop.f32.mrb[0].mxu0
        %v1849 = vadd.f32 %v1751, %v1848
        %1850 = vmatprep.mubr.f32.mxu0 0.0
        %1851 = vmatmul.mubr.f32.gmra.mrb[0].mxu0 %v1772
        %v1852 = vpop.f32.mrb[0].mxu0
        %v1853 = vadd.f32 %v1756, %v1852
        %v1854 = vpop.f32.mrb[0].mxu0
        %v1855 = vadd.f32 %v1756, %v1854
        %1856 = vmatprep.mubr.f32.mxu0 0.0
        %1857 = vmatmul.mubr.f32.gmra.mrb[0].mxu0 %v1775
        %v1858 = vpop.f32.mrb[0].mxu0
        %v1859 = vadd.f32 %v1761, %v1858
        %v1860 = vpop.f32.mrb[0].mxu0
        %v1861 = vadd.f32 %v1761, %v1860
        %1862 = vmatprep.mubr.f32.mxu0 0.0
        %1863 = vmatmul.mubr.f32.gmra.mrb[0].mxu0 %v1778
        %v1864 = vpop.f32.mrb[0].mxu0
        %v1865 = vadd.f32 %v1766, %v1864
        %v1866 = vpop.f32.mrb[0].mxu0
        %v1867 = vadd.f32 %v1766, %v1866
        %1868 = vdwg.mxu0
        %1869 = vmatprep.subr.mxu0 0.0
        %1870 = vmatpush1.msra.mxu0 %v1730
        %1871 = vmatprep.subr.mxu0 0.0
        %1872 = vmatpush1.msra.mxu0 %v1733
        %1873 = vmatprep.subr.mxu0 0.0
        %1874 = vmatpush1.msra.mxu0 %v1736
        %1875 = vmatprep.subr.mxu0 0.0
        %1876 = vmatpush1.msra.mxu0 %v1739
        %1877 = vmatprep.subr.mxu0 0.0
        %1878 = vmatpush1.msra.mxu0 0.0
        %1879 = vmatprep.subr.mxu0 0.0
        %1880 = vmatpush1.msra.mxu0 0.0
        %1881 = vmatprep.subr.mxu0 0.0
        %1882 = vmatpush1.msra.mxu0 0.0
        %1883 = vmatprep.subr.mxu0 0.0
        %1884 = vmatpush1.msra.mxu0 0.0
        %1885 = vmatprep.subr.mxu0 0.0
        %1886 = vmatpush1.msra.mxu0 0.0
        %1887 = vmatprep.subr.mxu0 0.0
        %1888 = vmatpush1.msra.mxu0 0.0
        %1889 = vmatprep.subr.mxu0 0.0
        %1890 = vmatpush1.msra.mxu0 0.0
        %1891 = vmatprep.subr.mxu0 0.0
        %1892 = vmatpush1.msra.mxu0 0.0
        %1893 = vmatprep.subr.mxu0 0.0
        %1894 = vmatpush1.msra.mxu0 0.0
        %1895 = vmatprep.subr.mxu0 0.0
        %1896 = vmatpush1.msra.mxu0 0.0
        %1897 = vmatprep.subr.mxu0 0.0
        %1898 = vmatpush1.msra.mxu0 0.0
        %1899 = vmatprep.subr.mxu0 0.0
        %1900 = vmatpush1.msra.mxu0 0.0
        %1901 = vmatprep.subr.mxu0 0.0
        %1902 = vmatpush1.msra.mxu0 0.0
        %1903 = vmatprep.subr.mxu0 0.0
        %1904 = vmatpush1.msra.mxu0 0.0
        %1905 = vmatprep.subr.mxu0 0.0
        %1906 = vmatpush1.msra.mxu0 0.0
        %1907 = vmatprep.subr.mxu0 0.0
        %1908 = vmatpush1.msra.mxu0 0.0
        %1909 = vmatprep.subr.mxu0 0.0
        %1910 = vmatpush1.msra.mxu0 0.0
        %1911 = vmatprep.subr.mxu0 0.0
        %1912 = vmatpush1.msra.mxu0 0.0
        %1913 = vmatprep.subr.mxu0 0.0
        %1914 = vmatpush1.msra.mxu0 0.0
        %1915 = vmatprep.subr.mxu0 0.0
        %1916 = vmatpush1.msra.mxu0 0.0
        %1917 = vmatprep.subr.mxu0 0.0
        %1918 = vmatpush1.msra.mxu0 0.0
        %1919 = vmatprep.subr.mxu0 0.0
        %1920 = vmatpush1.msra.mxu0 0.0
        %1921 = vmatprep.subr.mxu0 0.0
        %1922 = vmatpush1.msra.mxu0 0.0
        %1923 = vmatprep.subr.mxu0 0.0
        %1924 = vmatpush1.msra.mxu0 0.0
        %1925 = vmatprep.subr.mxu0 0.0
        %1926 = vmatpush1.msra.mxu0 0.0
        %1927 = vmatprep.subr.mxu0 0.0
        %1928 = vmatpush1.msra.mxu0 0.0
        %1929 = vmatprep.subr.mxu0 0.0
        %1930 = vmatpush1.msra.mxu0 0.0
        %1931 = vmatprep.subr.mxu0 0.0
        %1932 = vmatpush1.msra.mxu0 0.0
        %1933 = vmatprep.mubr.f32.mxu0 0.0
        %1934 = vmatmul.mubr.f32.gmra.mrb[0].mxu0 %v1769
        %v1935 = vpop.f32.mrb[0].mxu0
        %v1936 = vadd.f32 %v1751, %v1935
        %v1937 = vpop.f32.mrb[0].mxu0
        %1938 = vmatprep.mubr.f32.mxu0 0.0
        %1939 = vmatmul.mubr.f32.gmra.mrb[0].mxu0 %v1772
        %v1940 = vpop.f32.mrb[0].mxu0
        %v1941 = vadd.f32 %v1756, %v1940
        %v1942 = vpop.f32.mrb[0].mxu0
        %1943 = vmatprep.mubr.f32.mxu0 0.0
        %1944 = vmatmul.mubr.f32.gmra.mrb[0].mxu0 %v1775
        %v1945 = vpop.f32.mrb[0].mxu0
        %v1946 = vadd.f32 %v1761, %v1945
        %v1947 = vpop.f32.mrb[0].mxu0
        %1948 = vmatprep.mubr.f32.mxu0 0.0
        %1949 = vmatmul.mubr.f32.gmra.mrb[0].mxu0 %v1778
        %v1950 = vpop.f32.mrb[0].mxu0
        %v1951 = vadd.f32 %v1766, %v1950
        %v1952 = vpop.f32.mrb[0].mxu0
        %1953 = vdwg.mxu0
        %v1954 = vtanh.pop %v1847
        %v1955 = vtanh.pop %v1849
        %v1956 = vtanh.pop %v1936
        %v1957 = vtanh.pop %v1853
        %v1958 = vtanh.pop %v1855
        %v1959 = vtanh.pop %v1941
        %v1960 = vtanh.pop %v1859
        %v1961 = vtanh.pop %v1861
        %v1962 = vtanh.pop %v1946
        %v1963 = vtanh.pop %v1865
        %v1964 = vtanh.pop %v1867
        %v1965 = vtanh.pop %v1951
        %v1966 = vld [vmem:[%s7] sm:$0x1f]
        %v1967 = vld [vmem:[%s8] sm:$0x1f]
        %1969 = vset.pattern.permute.xlu0 0
        %1970 = vperm.xlu0 %1969, %v1967
        %v1971 = vpop.permute.xlu0 %1970
        %v1974 = vsel %vm611, %v1966, 0
        %1976 = vmatprep.subr.mxu0 %v1955
        %1977 = vmatpush1.msra.mxu0 %v1954
        %1978 = vmatprep.subr.mxu0 %v1958
        %1979 = vmatpush1.msra.mxu0 %v1957
        %1980 = vmatprep.subr.mxu0 %v1961
        %1981 = vmatpush1.msra.mxu0 %v1960
        %1982 = vmatprep.subr.mxu0 %v1964
        %1983 = vmatpush1.msra.mxu0 %v1963
        %1984 = vmatprep.subr.mxu0 0.0
        %1985 = vmatpush1.msra.mxu0 0.0
        %1986 = vmatprep.subr.mxu0 0.0
        %1987 = vmatpush1.msra.mxu0 0.0
        %1988 = vmatprep.subr.mxu0 0.0
        %1989 = vmatpush1.msra.mxu0 0.0
        %1990 = vmatprep.subr.mxu0 0.0
        %1991 = vmatpush1.msra.mxu0 0.0
        %1992 = vmatprep.subr.mxu0 0.0
        %1993 = vmatpush1.msra.mxu0 0.0
        %1994 = vmatprep.subr.mxu0 0.0
        %1995 = vmatpush1.msra.mxu0 0.0
        %1996 = vmatprep.subr.mxu0 0.0
        %1997 = vmatpush1.msra.mxu0 0.0
        %1998 = vmatprep.subr.mxu0 0.0
        %1999 = vmatpush1.msra.mxu0 0.0
        %2000 = vmatprep.subr.mxu0 0.0
        %2001 = vmatpush1.msra.mxu0 0.0
        %2002 = vmatprep.subr.mxu0 0.0
        %2003 = vmatpush1.msra.mxu0 0.0
        %2004 = vmatprep.subr.mxu0 0.0
        %2005 = vmatpush1.msra.mxu0 0.0
        %2006 = vmatprep.subr.mxu0 0.0
        %2007 = vmatpush1.msra.mxu0 0.0
        %2008 = vmatprep.subr.mxu0 0.0
        %2009 = vmatpush1.msra.mxu0 0.0
        %2010 = vmatprep.subr.mxu0 0.0
        %2011 = vmatpush1.msra.mxu0 0.0
        %2012 = vmatprep.subr.mxu0 0.0
        %2013 = vmatpush1.msra.mxu0 0.0
        %2014 = vmatprep.subr.mxu0 0.0
        %2015 = vmatpush1.msra.mxu0 0.0
        %2016 = vmatprep.subr.mxu0 0.0
        %2017 = vmatpush1.msra.mxu0 0.0
        %2018 = vmatprep.subr.mxu0 0.0
        %2019 = vmatpush1.msra.mxu0 0.0
        %2020 = vmatprep.subr.mxu0 0.0
        %2021 = vmatpush1.msra.mxu0 0.0
        %2022 = vmatprep.subr.mxu0 0.0
        %2023 = vmatpush1.msra.mxu0 0.0
        %2024 = vmatprep.subr.mxu0 0.0
        %2025 = vmatpush1.msra.mxu0 0.0
        %2026 = vmatprep.subr.mxu0 0.0
        %2027 = vmatpush1.msra.mxu0 0.0
        %2028 = vmatprep.subr.mxu0 0.0
        %2029 = vmatpush1.msra.mxu0 0.0
        %2030 = vmatprep.subr.mxu0 0.0
        %2031 = vmatpush1.msra.mxu0 0.0
        %2032 = vmatprep.subr.mxu0 0.0
        %2033 = vmatpush1.msra.mxu0 0.0
        %2034 = vmatprep.subr.mxu0 0.0
        %2035 = vmatpush1.msra.mxu0 0.0
        %2036 = vmatprep.subr.mxu0 0.0
        %2037 = vmatpush1.msra.mxu0 0.0
        %2038 = vmatprep.subr.mxu0 0.0
        %2039 = vmatpush1.msra.mxu0 0.0
        %2040 = vmatprep.mubr.f32.mxu0 0.0
        %2041 = vmatmul.mubr.f32.gmra.mrb[0].mxu0 %v1974
        %v2042 = vpop.f32.mrb[0].mxu0
        %v2043 = vadd.f32 %v1971, %v2042
        %v2044 = vpop.f32.mrb[0].mxu0
        %v2045 = vadd.f32 %v1971, %v2044
        %2046 = vdwg.mxu0
        %2047 = vmatprep.subr.mxu0 0.0
        %2048 = vmatpush1.msra.mxu0 %v1956
        %2049 = vmatprep.subr.mxu0 0.0
        %2050 = vmatpush1.msra.mxu0 %v1959
        %2051 = vmatprep.subr.mxu0 0.0
        %2052 = vmatpush1.msra.mxu0 %v1962
        %2053 = vmatprep.subr.mxu0 0.0
        %2054 = vmatpush1.msra.mxu0 %v1965
        %2055 = vmatprep.subr.mxu0 0.0
        %2056 = vmatpush1.msra.mxu0 0.0
        %2057 = vmatprep.subr.mxu0 0.0
        %2058 = vmatpush1.msra.mxu0 0.0
        %2059 = vmatprep.subr.mxu0 0.0
        %2060 = vmatpush1.msra.mxu0 0.0
        %2061 = vmatprep.subr.mxu0 0.0
        %2062 = vmatpush1.msra.mxu0 0.0
        %2063 = vmatprep.subr.mxu0 0.0
        %2064 = vmatpush1.msra.mxu0 0.0
        %2065 = vmatprep.subr.mxu0 0.0
        %2066 = vmatpush1.msra.mxu0 0.0
        %2067 = vmatprep.subr.mxu0 0.0
        %2068 = vmatpush1.msra.mxu0 0.0
        %2069 = vmatprep.subr.mxu0 0.0
        %2070 = vmatpush1.msra.mxu0 0.0
        %2071 = vmatprep.subr.mxu0 0.0
        %2072 = vmatpush1.msra.mxu0 0.0
        %2073 = vmatprep.subr.mxu0 0.0
        %2074 = vmatpush1.msra.mxu0 0.0
        %2075 = vmatprep.subr.mxu0 0.0
        %2076 = vmatpush1.msra.mxu0 0.0
        %2077 = vmatprep.subr.mxu0 0.0
        %2078 = vmatpush1.msra.mxu0 0.0
        %2079 = vmatprep.subr.mxu0 0.0
        %2080 = vmatpush1.msra.mxu0 0.0
        %2081 = vmatprep.subr.mxu0 0.0
        %2082 = vmatpush1.msra.mxu0 0.0
        %2083 = vmatprep.subr.mxu0 0.0
        %2084 = vmatpush1.msra.mxu0 0.0
        %2085 = vmatprep.subr.mxu0 0.0
        %2086 = vmatpush1.msra.mxu0 0.0
        %2087 = vmatprep.subr.mxu0 0.0
        %2088 = vmatpush1.msra.mxu0 0.0
        %2089 = vmatprep.subr.mxu0 0.0
        %2090 = vmatpush1.msra.mxu0 0.0
        %2091 = vmatprep.subr.mxu0 0.0
        %2092 = vmatpush1.msra.mxu0 0.0
        %2093 = vmatprep.subr.mxu0 0.0
        %2094 = vmatpush1.msra.mxu0 0.0
        %2095 = vmatprep.subr.mxu0 0.0
        %2096 = vmatpush1.msra.mxu0 0.0
        %2097 = vmatprep.subr.mxu0 0.0
        %2098 = vmatpush1.msra.mxu0 0.0
        %2099 = vmatprep.subr.mxu0 0.0
        %2100 = vmatpush1.msra.mxu0 0.0
        %2101 = vmatprep.subr.mxu0 0.0
        %2102 = vmatpush1.msra.mxu0 0.0
        %2103 = vmatprep.subr.mxu0 0.0
        %2104 = vmatpush1.msra.mxu0 0.0
        %2105 = vmatprep.subr.mxu0 0.0
        %2106 = vmatpush1.msra.mxu0 0.0
        %2107 = vmatprep.subr.mxu0 0.0
        %2108 = vmatpush1.msra.mxu0 0.0
        %2109 = vmatprep.subr.mxu0 0.0
        %2110 = vmatpush1.msra.mxu0 0.0
        %2111 = vmatprep.mubr.f32.mxu0 0.0
        %2112 = vmatmul.mubr.f32.gmra.mrb[0].mxu0 %v1974
        %v2113 = vpop.f32.mrb[0].mxu0
        %v2114 = vadd.f32 %v1971, %v2113
        %v2115 = vpop.f32.mrb[0].mxu0
        %2116 = vdwg.mxu0
        %v2117 = vtanh.pop %v2043
        %v2118 = vtanh.pop %v2045
        %v2119 = vtanh.pop %v2114
        %v2120 = vld [vmem:[%s316 + $0x48] sm:$0xf]
        %v2121 = vld [vmem:[%s316 + $0x50] sm:$0xf]
        %v2122 = vld [vmem:[%s316 + $0x58] sm:$0xf]
        %v2123 = vmul.f32 %v2120, 2.0
        %v2124 = vmul.f32 %v2121, 2.0
        %v2125 = vmul.f32 %v2122, 2.0
        %v2129 = vrot.slane %v2117, 1
        %v2130 = vrot.slane %v2118, 1
        %v2131 = vrot.slane %v2119, 1
        %v2135 = vmul.f32 %v2123, %v2129
        %v2136 = vmul.f32 %v2124, %v2130
        %v2137 = vmul.f32 %v2125, %v2131
        %v2138 = vadd.f32 %v2117, %v2135
        %v2139 = vadd.f32 %v2118, %v2136
        %v2140 = vadd.f32 %v2119, %v2137
        %v2141 = vmul.f32 %v2120, %v2129
        %v2142 = vmul.f32 %v2121, %v2130
        %v2143 = vmul.f32 %v2122, %v2131
        %v2147 = vrot.slane %v2141, 1
        %v2148 = vrot.slane %v2142, 1
        %v2149 = vrot.slane %v2143, 1
        %v2153 = vadd.f32 %v2138, %v2147
        %v2154 = vadd.f32 %v2139, %v2148
        %v2155 = vadd.f32 %v2140, %v2149
        %v2156 = vmul.f32 %v2120, 10.0
        %v2157 = vmul.f32 %v2121, 10.0
        %v2158 = vmul.f32 %v2122, 10.0
        %v2159 = vmul.f32 %v2156, %v2129
        %v2160 = vmul.f32 %v2157, %v2130
        %v2161 = vmul.f32 %v2158, %v2131
        %v2165 = vrot.slane %v2159, 2
        %v2166 = vrot.slane %v2160, 2
        %v2167 = vrot.slane %v2161, 2
        %v2171 = vadd.f32 %v2153, %v2165
        %v2172 = vadd.f32 %v2154, %v2166
        %v2173 = vadd.f32 %v2155, %v2167
        %v2174 = vrot.slane %v2141, 3
        %v2175 = vrot.slane %v2142, 3
        %v2176 = vrot.slane %v2143, 3
        %v2180 = vadd.f32 %v2171, %v2174
        %v2181 = vadd.f32 %v2172, %v2175
        %v2182 = vadd.f32 %v2173, %v2176
        %v2186 = vcombine.low %v2180, %v2181
        %v2188 = vunpack.c.l.s4 1966171168
        %v2189 = vunpack.c.0.s8 %v2188
        %v2190 = vlaneseq
        %v2191 = vshrl.u32 %v2190, 7
        %v2192 = vsub.s32 %v2189, %v2191
        %v2193 = vrot.slane %v2186, %v2192
        %v2195 = vunpack.c.l.s4 1966171168
        %v2196 = vunpack.c.0.s8 %v2195
        %v2197 = vlaneseq
        %v2198 = vshrl.u32 %v2197, 7
        %v2199 = vsub.s32 %v2196, %v2198
        %v2200 = vrot.slane %v2182, %v2199
        %v2201 = vcombine.low %v2193, %v2200
        %v2203 = vunpack.c.l.s4 1966171168
        %v2204 = vunpack.c.0.s8 %v2203
        %v2205 = vlaneseq
        %v2206 = vshrl.u32 %v2205, 7
        %v2207 = vsub.s32 %v2204, %v2206
        %v2208 = vrot.slane %v2201, %v2207
        %2210 = vst.msk [vmem:[%s350 + $0x3] sm:$0x7] %vm1283, %v2208
        %s2211 = sand.u32 %s228, 1
        %s2212 = scalar_lea.sflag [#allocation4], %s2211
        %s2213 = sand.u32 %s228, 1
        %s2214 = smul.addr %s2213, 6
        %s2215 = scalar_lea.vmem [#allocation5], %s2214
        // Predicated region
        $region61: #{tpu_custom_call.1} parent=55 // pred_check
          %p2216 = pneg %p238
        $region62: #{tpu_custom_call.1} parent=55 // pred_check_branch
          %2218 = sbr.rel (%p2216) target = $region64
        $region63: #{tpu_custom_call.1} parent=55 // pred_region
          %s2219 = smul.u32 6, %s26
          %s2221 = ssub.s32 96, 96
          %2222 = vsyncadd %s2212, %s2221
          %s2223 = smul.addr %s2219, 16
          %s2224 = scalar_lea.hbm %s9, %s2223
          %s2226 = sshll.u32 %s2215, 4
          %s2227 = int_to_ptr.vmem [resolvable:$true] %s2226
          %2229 = dma.vmem_to_hbm [thread:$0]  %s2227, 96, %s2224, %s2212
        $region64: #{tpu_custom_call.1} parent=55 // pred_fallthru
          _
      $region56: #{tpu_custom_call.1} parent=5 // pred_fallthru
        _
      %p2230 = scmp.le.s32.totalorder 2, %s21
      // Predicated region
      $region65: #{tpu_custom_call.1} parent=5 // pred_check
        %p2231 = pneg %p2230
      $region66: #{tpu_custom_call.1} parent=5 // pred_check_branch
        %2233 = sbr.rel (%p2231) target = $region68
      $region67: #{tpu_custom_call.1} parent=5 // pred_region
        %s2234 = ssub.s32 %s21, 2
        // Predicated region
        $region69: #{tpu_custom_call.1} parent=67 // pred_check
          %p2235 = pneg %p244
        $region70: #{tpu_custom_call.1} parent=67 // pred_check_branch
          %2237 = sbr.rel (%p2235) target = $region72
        $region71: #{tpu_custom_call.1} parent=67 // pred_region
          %s2238 = sand.u32 %s229, 1
          %s2239 = scalar_lea.sflag [#allocation4], %s2238
          %s2240 = sand.u32 %s229, 1
          %s2241 = smul.addr %s2240, 6
          %s2242 = scalar_lea.vmem [#allocation5], %s2241
          %2243 = dma.done %s2239, 96
        $region72: #{tpu_custom_call.1} parent=67 // pred_fallthru
          _
      $region68: #{tpu_custom_call.1} parent=5 // pred_fallthru
        _
    $region6: #{tpu_custom_call.1} parent=1 // loop_footer
      %s25 = sadd.s32 1, %s21
    $region7: #{tpu_custom_call.1} parent=1 // loop_footer_branch
      %20 = sbr.rel target = $region3
    $region8: #{tpu_custom_call.1} parent=1 // loop_exit
      _
    %2244 = vsyncpa [#allocation3], 1
    %s2245 = scalar_lea.sflag [#allocation3], 1
    %2246 = vsyncpa %s2245, 1
    %2247 = vsyncpa [#allocation4], 1
    %s2248 = scalar_lea.sflag [#allocation4], 1
    %2249 = vsyncpa %s2248, 1

</llo_original>
